<compile_context>
chip_gen: v7x
topology: tpu7x:2x2x1
jax: 0.10.0
libtpu: 0.0.40
codegen_flags: <defaults>
</compile_context>

<pallas_src>
import functools

import jax
import jax.numpy as jnp
from jax.experimental import pallas as pl
from jax.experimental.pallas import tpu as pltpu


# ---------------------------------------------------------------------------
# helpers
# ---------------------------------------------------------------------------
_LANE = 128
_TILE_M_TARGET = 2048                   # output pixels (lanes) per grid step
_VMEM_LIMIT_BYTES = 32 * 1024 * 1024    # explicit; safe on v5e / v6e / v7x


def _round_up(x, m):
    return (x + m - 1) // m * m


def _cdiv(a, b):
    return -(-a // b)


# ---------------------------------------------------------------------------
# Pallas kernels
# ---------------------------------------------------------------------------
def conv_stats_kernel(w_ref, p_ref, y_ref, mean_ref, m2_ref, *, true_m, tile_m):
    """Conv (MXU matmul) + per-tile BatchNorm partial statistics.

    Grid = (m_tiles,), fully "parallel" (no cross-tile carry).

    w_ref   : (Cout, K)        bf16 weights, resident across all grid steps
    p_ref   : (K, TILE_M)      bf16 im2col patches, lane-dense, streamed
    y_ref   : (Cout, TILE_M)   bf16 raw conv output (lane-dense store)
    mean_ref: (1, Cout, 1)     f32 per-tile mean over the valid lanes
    m2_ref  : (1, Cout, 1)     f32 per-tile centered sum of squares
    """
    mi = pl.program_id(0)

    # bf16 operands, f32 accumulation on the MXU.
    y = jnp.dot(w_ref[...], p_ref[...], preferred_element_type=jnp.float32)
    y_ref[...] = y.astype(y_ref.dtype)

    # Mask padded / out-of-bounds lanes out of the batch statistics.
    col = mi * tile_m + jax.lax.broadcasted_iota(jnp.int32, (1, tile_m), 1)
    valid = col < true_m                                          # (1, TILE_M)
    n_i = jnp.maximum(jnp.minimum(true_m - mi * tile_m, tile_m), 1)
    inv_n = 1.0 / n_i.astype(jnp.float32)

    y_valid = jnp.where(valid, y, 0.0)
    mean_i = jnp.sum(y_valid, axis=1, keepdims=True) * inv_n      # (Cout, 1)
    d = jnp.where(valid, y - mean_i, 0.0)
    m2_i = jnp.sum(d * d, axis=1, keepdims=True)                  # (Cout, 1)

    mean_ref[...] = mean_i.reshape(mean_ref.shape)
    m2_ref[...] = m2_i.reshape(m2_ref.shape)


def bn_relu_kernel(y_ref, scale_ref, shift_ref, o_ref, *, apply_relu):
    """Folded BatchNorm affine (+ ReLU) epilogue on the raw conv output.

    y_ref     : (Cout, TILE_M) bf16
    scale_ref : (Cout, 1)      f32  gamma * rsqrt(var + eps)
    shift_ref : (Cout, 1)      f32  beta - mean * scale
    o_ref     : (Cout, TILE_M) bf16
    """
    out = y_ref[...].astype(jnp.float32) * scale_ref[...] + shift_ref[...]
    if apply_relu:
        out = jnp.maximum(out, 0.0)
    o_ref[...] = out.astype(o_ref.dtype)


def maxpool_kernel(p_ref, o_ref):
    """Max over the 9 pooling taps.  p_ref: (9, C, TILE_M) -> o_ref: (C, TILE_M)."""
    o_ref[...] = jnp.max(p_ref[...], axis=0)


# ---------------------------------------------------------------------------
# XLA glue: transposed im2col, stats combine
# ---------------------------------------------------------------------------
def _im2col_t(x_cnhw, kh, kw, stride, padding, pad_value=0.0):
    """Transposed im2col: (C, N, H, W) -> (KH*KW*C, M), M = N*Ho*Wo.

    k index ordering is (tap_row, tap_col, channel), matching
    weight.reshape(Cout, KH*KW*Cin).
    """
    c, n, h, w = x_cnhw.shape
    ho = (h + 2 * padding - kh) // stride + 1
    wo = (w + 2 * padding - kw) // stride + 1
    xp = jnp.pad(
        x_cnhw,
        ((0, 0), (0, 0), (padding, padding), (padding, padding)),
        constant_values=pad_value,
    )
    taps = [xp[:, :, i:i + stride * ho:stride, j:j + stride * wo:stride]
            for i in range(kh) for j in range(kw)]
    pat = jnp.stack(taps, axis=0).reshape(kh * kw * c, n * ho * wo)
    return pat, ho, wo


def _bn_scale_shift(tile_mean, tile_m2, gamma, beta, true_m, tile_m, eps):
    """Chan parallel combine of per-tile (mean, centered M2) -> BN scale/shift."""
    m_tiles, cout = tile_mean.shape
    starts = jnp.arange(m_tiles, dtype=jnp.int32) * tile_m
    n_i = jnp.clip(true_m - starts, 0, tile_m).astype(jnp.float32)[:, None]
    n = float(true_m)
    mean = jnp.sum(n_i * tile_mean, axis=0) / n                        # (Cout,)
    m2 = (jnp.sum(tile_m2, axis=0)
          + jnp.sum(n_i * (tile_mean - mean) ** 2, axis=0))
    var = m2 / n                                     # biased var, as BN training
    scale = gamma.astype(jnp.float32) * jax.lax.rsqrt(var + eps)
    shift = beta.astype(jnp.float32) - mean * scale
    return scale.reshape(cout, 1), shift.reshape(cout, 1)


# ---------------------------------------------------------------------------
# ConvBlock / MaxPool wrappers
# ---------------------------------------------------------------------------
def conv_bn_relu(x_cnhw, weight, gamma, beta, *, stride, padding,
                 eps=1e-5, relu=True):
    """ConvBlock equivalent.  x: (Cin, N, H, W), weight: (Cout, KH, KW, Cin)."""
    cin, n, h, w = x_cnhw.shape
    cout, kh, kw, _ = weight.shape
    kdim = kh * kw * cin

    if kh == 1 and kw == 1 and stride == 1 and padding == 0:
        pat, ho, wo = x_cnhw.reshape(cin, n * h * w), h, w   # 1x1: no im2col
    else:
        pat, ho, wo = _im2col_t(x_cnhw, kh, kw, stride, padding)

    m = n * ho * wo
    m128 = _round_up(m, _LANE)
    if m128 != m:
        pat = jnp.pad(pat, ((0, 0), (0, m128 - m)))   # zero cols, masked in stats
    pat = pat.astype(jnp.bfloat16)
    wmat = weight.reshape(cout, kdim).astype(jnp.bfloat16)

    tile_m = min(_TILE_M_TARGET, m128)
    m_tiles = _cdiv(m128, tile_m)

    # Pass 1: matmul + per-tile BN statistics (single stream of the patches).
    y, tile_mean, tile_m2 = pl.pallas_call(
        functools.partial(conv_stats_kernel, true_m=m, tile_m=tile_m),
        out_shape=(
            jax.ShapeDtypeStruct((cout, m128), jnp.bfloat16),
            jax.ShapeDtypeStruct((m_tiles, cout, 1), jnp.float32),
            jax.ShapeDtypeStruct((m_tiles, cout, 1), jnp.float32),
        ),
        grid=(m_tiles,),
        in_specs=[
            pl.BlockSpec((cout, kdim), lambda i: (0, 0)),      # weights resident
            pl.BlockSpec((kdim, tile_m), lambda i: (0, i)),    # streamed patches
        ],
        out_specs=(
            pl.BlockSpec((cout, tile_m), lambda i: (0, i)),
            pl.BlockSpec((1, cout, 1), lambda i: (i, 0, 0)),
            pl.BlockSpec((1, cout, 1), lambda i: (i, 0, 0)),
        ),
        compiler_params=pltpu.CompilerParams(
            dimension_semantics=("parallel",),
            vmem_limit_bytes=_VMEM_LIMIT_BYTES,
        ),
    )(wmat, pat)

    # Tiny XLA combine of the per-tile stats into a folded per-channel FMA.
    scale, shift = _bn_scale_shift(tile_mean[..., 0], tile_m2[..., 0],
                                   gamma, beta, m, tile_m, eps)

    # Pass 2: BN affine + ReLU epilogue (reads back only Cout x M bf16).
    out = pl.pallas_call(
        functools.partial(bn_relu_kernel, apply_relu=relu),
        out_shape=jax.ShapeDtypeStruct((cout, m128), jnp.bfloat16),
        grid=(m_tiles,),
        in_specs=[
            pl.BlockSpec((cout, tile_m), lambda i: (0, i)),
            pl.BlockSpec((cout, 1), lambda i: (0, 0)),
            pl.BlockSpec((cout, 1), lambda i: (0, 0)),
        ],
        out_specs=pl.BlockSpec((cout, tile_m), lambda i: (0, i)),
        compiler_params=pltpu.CompilerParams(
            dimension_semantics=("parallel",),
            vmem_limit_bytes=_VMEM_LIMIT_BYTES,
        ),
    )(y, scale, shift)

    return out[:, :m].reshape(cout, n, ho, wo)


def maxpool_3x3_s2_p1(x_cnhw):
    """nn.MaxPool2d(kernel_size=3, stride=2, padding=1) equivalent, (C,N,H,W)."""
    c, n, h, w = x_cnhw.shape
    pat, ho, wo = _im2col_t(x_cnhw, 3, 3, stride=2, padding=1,
                            pad_value=-jnp.inf)
    m = n * ho * wo
    m128 = _round_up(m, _LANE)
    pat = pat.reshape(9, c, m).astype(jnp.bfloat16)
    if m128 != m:
        pat = jnp.pad(pat, ((0, 0), (0, 0), (0, m128 - m)),
                      constant_values=-jnp.inf)
    tile_m = min(_TILE_M_TARGET, m128)
    m_tiles = _cdiv(m128, tile_m)

    out = pl.pallas_call(
        maxpool_kernel,
        out_shape=jax.ShapeDtypeStruct((c, m128), jnp.bfloat16),
        grid=(m_tiles,),
        in_specs=[pl.BlockSpec((9, c, tile_m), lambda i: (0, 0, i))],
        out_specs=pl.BlockSpec((c, tile_m), lambda i: (0, i)),
        compiler_params=pltpu.CompilerParams(
            dimension_semantics=("parallel",),
            vmem_limit_bytes=_VMEM_LIMIT_BYTES,
        ),
    )(pat)
    return out[:, :m].reshape(c, n, ho, wo)


# ---------------------------------------------------------------------------
# StemBlock forward
# ---------------------------------------------------------------------------
def stem_block_forward(x_nchw, params):
    # NCHW (PyTorch) -> channel-major (C, N, H, W): pixels end up on lanes.
    # bf16 activations between blocks (math is f32 inside the kernels).
    x = jnp.transpose(x_nchw, (1, 0, 2, 3)).astype(jnp.bfloat16)

    # self.conv: ConvBlock(3 -> 16, k=3, s=2, p=1)
    fd = conv_bn_relu(x, *params["conv"], stride=2, padding=1)

    # self.left_side: ConvBlock(16 -> 8, 1x1), ConvBlock(8 -> 16, 3x3, s=2)
    fd_left = conv_bn_relu(fd, *params["left1"], stride=1, padding=0)
    fd_left = conv_bn_relu(fd_left, *params["left2"], stride=2, padding=1)

    # self.right_side: MaxPool2d(k=3, s=2, p=1)
    fd_right = maxpool_3x3_s2_p1(fd)

    # torch.cat(dim=1) == channel concat == axis 0 in channel-major layout.
    fd_cat = jnp.concatenate([fd_left, fd_right], axis=0)

    # self.conv_connect: ConvBlock(32 -> 16, k=3, s=1, p=1)
    out = conv_bn_relu(fd_cat, *params["connect"], stride=1, padding=1)

    # channel-major -> NCHW, back to f32 to match the PyTorch convention.
    return jnp.transpose(out, (1, 0, 2, 3)).astype(jnp.float32)


def init_params(key):
    """Deterministic synthetic parameters (shapes from the module __init__)."""
    def conv_block(key, cin, cout, kh, kw):
        kw_, kg, kb = jax.random.split(key, 3)
        # weight layout (Cout, KH, KW, Cin)  <->  torch (Cout, Cin, KH, KW) permuted
        w = jax.random.normal(kw_, (cout, kh, kw, cin), jnp.float32) * 0.1
        gamma = 1.0 + 0.1 * jax.random.normal(kg, (cout,), jnp.float32)
        beta = 0.1 * jax.random.normal(kb, (cout,), jnp.float32)
        return (w, gamma, beta)

    k1, k2, k3, k4 = jax.random.split(key, 4)
    return {
        "conv":    conv_block(k1, 3, 16, 3, 3),
        "left1":   conv_block(k2, 16, 8, 1, 1),
        "left2":   conv_block(k3, 8, 16, 3, 3),
        "connect": conv_block(k4, 32, 16, 3, 3),
    }


if __name__ == "__main__":
    key = jax.random.PRNGKey(0)
    k_x, k_p = jax.random.split(key)

    # Small NCHW input consistent with StemBlock (in_channel=3).
    x = jax.random.normal(k_x, (2, 3, 16, 16), jnp.float32)
    params = init_params(k_p)

    out = jax.jit(stem_block_forward)(x, params)
    out = jax.block_until_ready(out)

    assert out.shape == (2, 16, 4, 4), out.shape
    assert bool(jnp.all(jnp.isfinite(out)))
    print("KERNEL_OK")
</pallas_src>

<mosaic_0001>
module attributes {stable_mosaic.version = 11 : i64} {
  func.func @bn_relu_kernel(%arg0: i32, %arg1: memref<16x128xbf16, #tpu.memory_space<vmem>>, %arg2: memref<16x1xf32, #tpu.memory_space<vmem>>, %arg3: memref<16x1xf32, #tpu.memory_space<vmem>>, %arg4: memref<16x128xbf16, #tpu.memory_space<vmem>>) attributes {dimension_semantics = [#tpu.dimension_semantics<parallel>], iteration_bounds = array<i64: 1>, scalar_prefetch = 0 : i64, scratch_operands = 0 : i64, tpu.core_type = #tpu.core_type<tc>, window_params = [{transform_indices = @transform_0, window_bounds = array<i64: 16, 128>}, {pipeline_mode = #tpu.pipeline_mode<synchronous>, transform_indices = @transform_1, window_bounds = array<i64: 16, 1>}, {pipeline_mode = #tpu.pipeline_mode<synchronous>, transform_indices = @transform_2, window_bounds = array<i64: 16, 1>}, {transform_indices = @transform_3, window_bounds = array<i64: 16, 128>}]} {
    %c0 = arith.constant 0 : index
    %c0_0 = arith.constant 0 : index
    %0 = vector.load %arg1[%c0, %c0_0] : memref<16x128xbf16, #tpu.memory_space<vmem>>, vector<16x128xbf16>
    %1 = arith.extf %0 : vector<16x128xbf16> to vector<16x128xf32>
    %c0_1 = arith.constant 0 : index
    %c0_2 = arith.constant 0 : index
    %2 = vector.load %arg2[%c0_1, %c0_2] : memref<16x1xf32, #tpu.memory_space<vmem>>, vector<16x1xf32>
    %3 = vector.broadcast %2 : vector<16x1xf32> to vector<16x128xf32>
    %4 = arith.mulf %1, %3 : vector<16x128xf32>
    %c0_3 = arith.constant 0 : index
    %c0_4 = arith.constant 0 : index
    %5 = vector.load %arg3[%c0_3, %c0_4] : memref<16x1xf32, #tpu.memory_space<vmem>>, vector<16x1xf32>
    %6 = vector.broadcast %5 : vector<16x1xf32> to vector<16x128xf32>
    %7 = arith.addf %4, %6 : vector<16x128xf32>
    %cst = arith.constant 0.000000e+00 : f32
    %8 = vector.broadcast %cst : f32 to vector<16x128xf32>
    %9 = arith.maximumf %7, %8 : vector<16x128xf32>
    %10 = arith.truncf %9 : vector<16x128xf32> to vector<16x128xbf16>
    %c0_5 = arith.constant 0 : index
    %c0_6 = arith.constant 0 : index
    %11 = vector.load %arg4[%c0_5, %c0_6] : memref<16x128xbf16, #tpu.memory_space<vmem>>, vector<16x128xbf16>
    tpu.vector_store %arg4[%c0_5, %c0_6], %10 {strides = array<i32>} : memref<16x128xbf16, #tpu.memory_space<vmem>>, vector<16x128xbf16>,
    return
  }
  func.func @transform_0(%arg0: i32) -> (i32, i32) {
    %c0_i32 = arith.constant 0 : i32
    %c0_i32_0 = arith.constant 0 : i32
    return %c0_i32, %arg0 : i32, i32
  }
  func.func @transform_1(%arg0: i32) -> (i32, i32) {
    %c0_i32 = arith.constant 0 : i32
    %c0_i32_0 = arith.constant 0 : i32
    %c0_i32_1 = arith.constant 0 : i32
    return %c0_i32, %c0_i32_0 : i32, i32
  }
  func.func @transform_2(%arg0: i32) -> (i32, i32) {
    %c0_i32 = arith.constant 0 : i32
    %c0_i32_0 = arith.constant 0 : i32
    %c0_i32_1 = arith.constant 0 : i32
    return %c0_i32, %c0_i32_0 : i32, i32
  }
  func.func @transform_3(%arg0: i32) -> (i32, i32) {
    %c0_i32 = arith.constant 0 : i32
    %c0_i32_0 = arith.constant 0 : i32
    return %c0_i32, %arg0 : i32, i32
  }
}

module attributes {stable_mosaic.version = 11 : i64} {
  func.func @conv_stats_kernel(%arg0: i32, %arg1: memref<16x27xbf16, #tpu.memory_space<vmem>>, %arg2: memref<27x128xbf16, #tpu.memory_space<vmem>>, %arg3: memref<16x128xbf16, #tpu.memory_space<vmem>>, %arg4: memref<1x16x1xf32, #tpu.memory_space<vmem>>, %arg5: memref<1x16x1xf32, #tpu.memory_space<vmem>>) attributes {dimension_semantics = [#tpu.dimension_semantics<parallel>], iteration_bounds = array<i64: 1>, scalar_prefetch = 0 : i64, scratch_operands = 0 : i64, tpu.core_type = #tpu.core_type<tc>, window_params = [{pipeline_mode = #tpu.pipeline_mode<synchronous>, transform_indices = @transform_0, window_bounds = array<i64: 16, 27>}, {transform_indices = @transform_1, window_bounds = array<i64: 27, 128>}, {transform_indices = @transform_2, window_bounds = array<i64: 16, 128>}, {transform_indices = @transform_3, window_bounds = array<i64: 1, 16, 1>}, {transform_indices = @transform_4, window_bounds = array<i64: 1, 16, 1>}]} {
    %c0 = arith.constant 0 : index
    %c0_0 = arith.constant 0 : index
    %0 = vector.load %arg1[%c0, %c0_0] : memref<16x27xbf16, #tpu.memory_space<vmem>>, vector<16x27xbf16>
    %c0_1 = arith.constant 0 : index
    %c0_2 = arith.constant 0 : index
    %1 = vector.load %arg2[%c0_1, %c0_2] : memref<27x128xbf16, #tpu.memory_space<vmem>>, vector<27x128xbf16>
    %cst = arith.constant dense<0.000000e+00> : vector<16x128xf32>
    %2 = tpu.matmul %0, %1, %cst {dimension_numbers = #tpu.dot_dimension_numbers<[1], [0], [0], [1], [0, 0, 1, 1], [], []>} : vector<16x27xbf16>, vector<27x128xbf16>, vector<16x128xf32> -> vector<16x128xf32>
    %3 = arith.truncf %2 : vector<16x128xf32> to vector<16x128xbf16>
    %c0_3 = arith.constant 0 : index
    %c0_4 = arith.constant 0 : index
    %4 = vector.load %arg3[%c0_3, %c0_4] : memref<16x128xbf16, #tpu.memory_space<vmem>>, vector<16x128xbf16>
    tpu.vector_store %arg3[%c0_3, %c0_4], %3 {strides = array<i32>} : memref<16x128xbf16, #tpu.memory_space<vmem>>, vector<16x128xbf16>,
    %c128_i32 = arith.constant 128 : i32
    %5 = arith.muli %arg0, %c128_i32 : i32
    %6 = tpu.iota {dimensions = array<i32: 1>} : vector<1x128xi32>
    %7 = vector.broadcast %5 : i32 to vector<1x128xi32>
    %8 = arith.addi %7, %6 : vector<1x128xi32>
    %c128_i32_5 = arith.constant 128 : i32
    %9 = vector.broadcast %c128_i32_5 : i32 to vector<1x128xi32>
    %10 = arith.cmpi slt, %8, %9 : vector<1x128xi32>
    %c128_i32_6 = arith.constant 128 : i32
    %11 = arith.muli %arg0, %c128_i32_6 : i32
    %c128_i32_7 = arith.constant 128 : i32
    %12 = arith.subi %c128_i32_7, %11 : i32
    %c128_i32_8 = arith.constant 128 : i32
    %13 = arith.minsi %12, %c128_i32_8 : i32
    %c1_i32 = arith.constant 1 : i32
    %14 = arith.maxsi %13, %c1_i32 : i32
    %15 = arith.sitofp %14 : i32 to f32
    %cst_9 = arith.constant 1.000000e+00 : f32
    %16 = arith.divf %cst_9, %15 : f32
    %cst_10 = arith.constant 0.000000e+00 : f32
    %17 = vector.shape_cast %10 : vector<1x128xi1> to vector<1x128xi1>
    %18 = vector.broadcast %17 : vector<1x128xi1> to vector<16x128xi1>
    %19 = vector.broadcast %cst_10 : f32 to vector<16x128xf32>
    %20 = arith.select %18, %2, %19 : vector<16x128xi1>, vector<16x128xf32>
    %cst_11 = arith.constant dense<0.000000e+00> : vector<16xf32>
    %21 = vector.multi_reduction <add>, %20, %cst_11 [1] : vector<16x128xf32> to vector<16xf32>
    %22 = vector.shape_cast %21 : vector<16xf32> to vector<16x1xf32>
    %23 = vector.broadcast %16 : f32 to vector<16x1xf32>
    %24 = arith.mulf %22, %23 : vector<16x1xf32>
    %25 = vector.broadcast %24 : vector<16x1xf32> to vector<16x128xf32>
    %26 = arith.subf %2, %25 : vector<16x128xf32>
    %cst_12 = arith.constant 0.000000e+00 : f32
    %27 = vector.shape_cast %10 : vector<1x128xi1> to vector<1x128xi1>
    %28 = vector.broadcast %27 : vector<1x128xi1> to vector<16x128xi1>
    %29 = vector.broadcast %cst_12 : f32 to vector<16x128xf32>
    %30 = arith.select %28, %26, %29 : vector<16x128xi1>, vector<16x128xf32>
    %31 = arith.mulf %30, %30 : vector<16x128xf32>
    %cst_13 = arith.constant dense<0.000000e+00> : vector<16xf32>
    %32 = vector.multi_reduction <add>, %31, %cst_13 [1] : vector<16x128xf32> to vector<16xf32>
    %33 = vector.shape_cast %32 : vector<16xf32> to vector<16x1xf32>
    %34 = vector.shape_cast %24 : vector<16x1xf32> to vector<1x16x1xf32>
    %c0_14 = arith.constant 0 : index
    %c0_15 = arith.constant 0 : index
    %c0_16 = arith.constant 0 : index
    %35 = vector.load %arg4[%c0_14, %c0_15, %c0_16] : memref<1x16x1xf32, #tpu.memory_space<vmem>>, vector<1x16x1xf32>
    tpu.vector_store %arg4[%c0_14, %c0_15, %c0_16], %34 {strides = array<i32>} : memref<1x16x1xf32, #tpu.memory_space<vmem>>, vector<1x16x1xf32>,
    %36 = vector.shape_cast %33 : vector<16x1xf32> to vector<1x16x1xf32>
    %c0_17 = arith.constant 0 : index
    %c0_18 = arith.constant 0 : index
    %c0_19 = arith.constant 0 : index
    %37 = vector.load %arg5[%c0_17, %c0_18, %c0_19] : memref<1x16x1xf32, #tpu.memory_space<vmem>>, vector<1x16x1xf32>
    tpu.vector_store %arg5[%c0_17, %c0_18, %c0_19], %36 {strides = array<i32>} : memref<1x16x1xf32, #tpu.memory_space<vmem>>, vector<1x16x1xf32>,
    return
  }
  func.func @transform_0(%arg0: i32) -> (i32, i32) {
    %c0_i32 = arith.constant 0 : i32
    %c0_i32_0 = arith.constant 0 : i32
    %c0_i32_1 = arith.constant 0 : i32
    return %c0_i32, %c0_i32_0 : i32, i32
  }
  func.func @transform_1(%arg0: i32) -> (i32, i32) {
    %c0_i32 = arith.constant 0 : i32
    %c0_i32_0 = arith.constant 0 : i32
    return %c0_i32, %arg0 : i32, i32
  }
  func.func @transform_2(%arg0: i32) -> (i32, i32) {
    %c0_i32 = arith.constant 0 : i32
    %c0_i32_0 = arith.constant 0 : i32
    return %c0_i32, %arg0 : i32, i32
  }
  func.func @transform_3(%arg0: i32) -> (i32, i32, i32) {
    %c0_i32 = arith.constant 0 : i32
    %c0_i32_0 = arith.constant 0 : i32
    %c0_i32_1 = arith.constant 0 : i32
    return %arg0, %c0_i32, %c0_i32_0 : i32, i32, i32
  }
  func.func @transform_4(%arg0: i32) -> (i32, i32, i32) {
    %c0_i32 = arith.constant 0 : i32
    %c0_i32_0 = arith.constant 0 : i32
    %c0_i32_1 = arith.constant 0 : i32
    return %arg0, %c0_i32, %c0_i32_0 : i32, i32, i32
  }
}

module attributes {stable_mosaic.version = 11 : i64} {
  func.func @conv_stats_kernel(%arg0: i32, %arg1: memref<8x16xbf16, #tpu.memory_space<vmem>>, %arg2: memref<16x128xbf16, #tpu.memory_space<vmem>>, %arg3: memref<8x128xbf16, #tpu.memory_space<vmem>>, %arg4: memref<1x8x1xf32, #tpu.memory_space<vmem>>, %arg5: memref<1x8x1xf32, #tpu.memory_space<vmem>>) attributes {dimension_semantics = [#tpu.dimension_semantics<parallel>], iteration_bounds = array<i64: 1>, scalar_prefetch = 0 : i64, scratch_operands = 0 : i64, tpu.core_type = #tpu.core_type<tc>, window_params = [{pipeline_mode = #tpu.pipeline_mode<synchronous>, transform_indices = @transform_0, window_bounds = array<i64: 8, 16>}, {transform_indices = @transform_1, window_bounds = array<i64: 16, 128>}, {transform_indices = @transform_2, window_bounds = array<i64: 8, 128>}, {transform_indices = @transform_3, window_bounds = array<i64: 1, 8, 1>}, {transform_indices = @transform_4, window_bounds = array<i64: 1, 8, 1>}]} {
    %c0 = arith.constant 0 : index
    %c0_0 = arith.constant 0 : index
    %0 = vector.load %arg1[%c0, %c0_0] : memref<8x16xbf16, #tpu.memory_space<vmem>>, vector<8x16xbf16>
    %c0_1 = arith.constant 0 : index
    %c0_2 = arith.constant 0 : index
    %1 = vector.load %arg2[%c0_1, %c0_2] : memref<16x128xbf16, #tpu.memory_space<vmem>>, vector<16x128xbf16>
    %cst = arith.constant dense<0.000000e+00> : vector<8x128xf32>
    %2 = tpu.matmul %0, %1, %cst {dimension_numbers = #tpu.dot_dimension_numbers<[1], [0], [0], [1], [0, 0, 1, 1], [], []>} : vector<8x16xbf16>, vector<16x128xbf16>, vector<8x128xf32> -> vector<8x128xf32>
    %3 = arith.truncf %2 : vector<8x128xf32> to vector<8x128xbf16>
    %c0_3 = arith.constant 0 : index
    %c0_4 = arith.constant 0 : index
    %4 = vector.load %arg3[%c0_3, %c0_4] : memref<8x128xbf16, #tpu.memory_space<vmem>>, vector<8x128xbf16>
    tpu.vector_store %arg3[%c0_3, %c0_4], %3 {strides = array<i32>} : memref<8x128xbf16, #tpu.memory_space<vmem>>, vector<8x128xbf16>,
    %c128_i32 = arith.constant 128 : i32
    %5 = arith.muli %arg0, %c128_i32 : i32
    %6 = tpu.iota {dimensions = array<i32: 1>} : vector<1x128xi32>
    %7 = vector.broadcast %5 : i32 to vector<1x128xi32>
    %8 = arith.addi %7, %6 : vector<1x128xi32>
    %c128_i32_5 = arith.constant 128 : i32
    %9 = vector.broadcast %c128_i32_5 : i32 to vector<1x128xi32>
    %10 = arith.cmpi slt, %8, %9 : vector<1x128xi32>
    %c128_i32_6 = arith.constant 128 : i32
    %11 = arith.muli %arg0, %c128_i32_6 : i32
    %c128_i32_7 = arith.constant 128 : i32
    %12 = arith.subi %c128_i32_7, %11 : i32
    %c128_i32_8 = arith.constant 128 : i32
    %13 = arith.minsi %12, %c128_i32_8 : i32
    %c1_i32 = arith.constant 1 : i32
    %14 = arith.maxsi %13, %c1_i32 : i32
    %15 = arith.sitofp %14 : i32 to f32
    %cst_9 = arith.constant 1.000000e+00 : f32
    %16 = arith.divf %cst_9, %15 : f32
    %cst_10 = arith.constant 0.000000e+00 : f32
    %17 = vector.shape_cast %10 : vector<1x128xi1> to vector<1x128xi1>
    %18 = vector.broadcast %17 : vector<1x128xi1> to vector<8x128xi1>
    %19 = vector.broadcast %cst_10 : f32 to vector<8x128xf32>
    %20 = arith.select %18, %2, %19 : vector<8x128xi1>, vector<8x128xf32>
    %cst_11 = arith.constant dense<0.000000e+00> : vector<8xf32>
    %21 = vector.multi_reduction <add>, %20, %cst_11 [1] : vector<8x128xf32> to vector<8xf32>
    %22 = vector.shape_cast %21 : vector<8xf32> to vector<8x1xf32>
    %23 = vector.broadcast %16 : f32 to vector<8x1xf32>
    %24 = arith.mulf %22, %23 : vector<8x1xf32>
    %25 = vector.broadcast %24 : vector<8x1xf32> to vector<8x128xf32>
    %26 = arith.subf %2, %25 : vector<8x128xf32>
    %cst_12 = arith.constant 0.000000e+00 : f32
    %27 = vector.shape_cast %10 : vector<1x128xi1> to vector<1x128xi1>
    %28 = vector.broadcast %27 : vector<1x128xi1> to vector<8x128xi1>
    %29 = vector.broadcast %cst_12 : f32 to vector<8x128xf32>
    %30 = arith.select %28, %26, %29 : vector<8x128xi1>, vector<8x128xf32>
    %31 = arith.mulf %30, %30 : vector<8x128xf32>
    %cst_13 = arith.constant dense<0.000000e+00> : vector<8xf32>
    %32 = vector.multi_reduction <add>, %31, %cst_13 [1] : vector<8x128xf32> to vector<8xf32>
    %33 = vector.shape_cast %32 : vector<8xf32> to vector<8x1xf32>
    %34 = vector.shape_cast %24 : vector<8x1xf32> to vector<1x8x1xf32>
    %c0_14 = arith.constant 0 : index
    %c0_15 = arith.constant 0 : index
    %c0_16 = arith.constant 0 : index
    %35 = vector.load %arg4[%c0_14, %c0_15, %c0_16] : memref<1x8x1xf32, #tpu.memory_space<vmem>>, vector<1x8x1xf32>
    tpu.vector_store %arg4[%c0_14, %c0_15, %c0_16], %34 {strides = array<i32>} : memref<1x8x1xf32, #tpu.memory_space<vmem>>, vector<1x8x1xf32>,
    %36 = vector.shape_cast %33 : vector<8x1xf32> to vector<1x8x1xf32>
    %c0_17 = arith.constant 0 : index
    %c0_18 = arith.constant 0 : index
    %c0_19 = arith.constant 0 : index
    %37 = vector.load %arg5[%c0_17, %c0_18, %c0_19] : memref<1x8x1xf32, #tpu.memory_space<vmem>>, vector<1x8x1xf32>
    tpu.vector_store %arg5[%c0_17, %c0_18, %c0_19], %36 {strides = array<i32>} : memref<1x8x1xf32, #tpu.memory_space<vmem>>, vector<1x8x1xf32>,
    return
  }
  func.func @transform_0(%arg0: i32) -> (i32, i32) {
    %c0_i32 = arith.constant 0 : i32
    %c0_i32_0 = arith.constant 0 : i32
    %c0_i32_1 = arith.constant 0 : i32
    return %c0_i32, %c0_i32_0 : i32, i32
  }
  func.func @transform_1(%arg0: i32) -> (i32, i32) {
    %c0_i32 = arith.constant 0 : i32
    %c0_i32_0 = arith.constant 0 : i32
    return %c0_i32, %arg0 : i32, i32
  }
  func.func @transform_2(%arg0: i32) -> (i32, i32) {
    %c0_i32 = arith.constant 0 : i32
    %c0_i32_0 = arith.constant 0 : i32
    return %c0_i32, %arg0 : i32, i32
  }
  func.func @transform_3(%arg0: i32) -> (i32, i32, i32) {
    %c0_i32 = arith.constant 0 : i32
    %c0_i32_0 = arith.constant 0 : i32
    %c0_i32_1 = arith.constant 0 : i32
    return %arg0, %c0_i32, %c0_i32_0 : i32, i32, i32
  }
  func.func @transform_4(%arg0: i32) -> (i32, i32, i32) {
    %c0_i32 = arith.constant 0 : i32
    %c0_i32_0 = arith.constant 0 : i32
    %c0_i32_1 = arith.constant 0 : i32
    return %arg0, %c0_i32, %c0_i32_0 : i32, i32, i32
  }
}

module attributes {stable_mosaic.version = 11 : i64} {
  func.func @bn_relu_kernel(%arg0: i32, %arg1: memref<8x128xbf16, #tpu.memory_space<vmem>>, %arg2: memref<8x1xf32, #tpu.memory_space<vmem>>, %arg3: memref<8x1xf32, #tpu.memory_space<vmem>>, %arg4: memref<8x128xbf16, #tpu.memory_space<vmem>>) attributes {dimension_semantics = [#tpu.dimension_semantics<parallel>], iteration_bounds = array<i64: 1>, scalar_prefetch = 0 : i64, scratch_operands = 0 : i64, tpu.core_type = #tpu.core_type<tc>, window_params = [{transform_indices = @transform_0, window_bounds = array<i64: 8, 128>}, {pipeline_mode = #tpu.pipeline_mode<synchronous>, transform_indices = @transform_1, window_bounds = array<i64: 8, 1>}, {pipeline_mode = #tpu.pipeline_mode<synchronous>, transform_indices = @transform_2, window_bounds = array<i64: 8, 1>}, {transform_indices = @transform_3, window_bounds = array<i64: 8, 128>}]} {
    %c0 = arith.constant 0 : index
    %c0_0 = arith.constant 0 : index
    %0 = vector.load %arg1[%c0, %c0_0] : memref<8x128xbf16, #tpu.memory_space<vmem>>, vector<8x128xbf16>
    %1 = arith.extf %0 : vector<8x128xbf16> to vector<8x128xf32>
    %c0_1 = arith.constant 0 : index
    %c0_2 = arith.constant 0 : index
    %2 = vector.load %arg2[%c0_1, %c0_2] : memref<8x1xf32, #tpu.memory_space<vmem>>, vector<8x1xf32>
    %3 = vector.broadcast %2 : vector<8x1xf32> to vector<8x128xf32>
    %4 = arith.mulf %1, %3 : vector<8x128xf32>
    %c0_3 = arith.constant 0 : index
    %c0_4 = arith.constant 0 : index
    %5 = vector.load %arg3[%c0_3, %c0_4] : memref<8x1xf32, #tpu.memory_space<vmem>>, vector<8x1xf32>
    %6 = vector.broadcast %5 : vector<8x1xf32> to vector<8x128xf32>
    %7 = arith.addf %4, %6 : vector<8x128xf32>
    %cst = arith.constant 0.000000e+00 : f32
    %8 = vector.broadcast %cst : f32 to vector<8x128xf32>
    %9 = arith.maximumf %7, %8 : vector<8x128xf32>
    %10 = arith.truncf %9 : vector<8x128xf32> to vector<8x128xbf16>
    %c0_5 = arith.constant 0 : index
    %c0_6 = arith.constant 0 : index
    %11 = vector.load %arg4[%c0_5, %c0_6] : memref<8x128xbf16, #tpu.memory_space<vmem>>, vector<8x128xbf16>
    tpu.vector_store %arg4[%c0_5, %c0_6], %10 {strides = array<i32>} : memref<8x128xbf16, #tpu.memory_space<vmem>>, vector<8x128xbf16>,
    return
  }
  func.func @transform_0(%arg0: i32) -> (i32, i32) {
    %c0_i32 = arith.constant 0 : i32
    %c0_i32_0 = arith.constant 0 : i32
    return %c0_i32, %arg0 : i32, i32
  }
  func.func @transform_1(%arg0: i32) -> (i32, i32) {
    %c0_i32 = arith.constant 0 : i32
    %c0_i32_0 = arith.constant 0 : i32
    %c0_i32_1 = arith.constant 0 : i32
    return %c0_i32, %c0_i32_0 : i32, i32
  }
  func.func @transform_2(%arg0: i32) -> (i32, i32) {
    %c0_i32 = arith.constant 0 : i32
    %c0_i32_0 = arith.constant 0 : i32
    %c0_i32_1 = arith.constant 0 : i32
    return %c0_i32, %c0_i32_0 : i32, i32
  }
  func.func @transform_3(%arg0: i32) -> (i32, i32) {
    %c0_i32 = arith.constant 0 : i32
    %c0_i32_0 = arith.constant 0 : i32
    return %c0_i32, %arg0 : i32, i32
  }
}

module attributes {stable_mosaic.version = 11 : i64} {
  func.func @conv_stats_kernel(%arg0: i32, %arg1: memref<16x72xbf16, #tpu.memory_space<vmem>>, %arg2: memref<72x128xbf16, #tpu.memory_space<vmem>>, %arg3: memref<16x128xbf16, #tpu.memory_space<vmem>>, %arg4: memref<1x16x1xf32, #tpu.memory_space<vmem>>, %arg5: memref<1x16x1xf32, #tpu.memory_space<vmem>>) attributes {dimension_semantics = [#tpu.dimension_semantics<parallel>], iteration_bounds = array<i64: 1>, scalar_prefetch = 0 : i64, scratch_operands = 0 : i64, tpu.core_type = #tpu.core_type<tc>, window_params = [{pipeline_mode = #tpu.pipeline_mode<synchronous>, transform_indices = @transform_0, window_bounds = array<i64: 16, 72>}, {transform_indices = @transform_1, window_bounds = array<i64: 72, 128>}, {transform_indices = @transform_2, window_bounds = array<i64: 16, 128>}, {transform_indices = @transform_3, window_bounds = array<i64: 1, 16, 1>}, {transform_indices = @transform_4, window_bounds = array<i64: 1, 16, 1>}]} {
    %c0 = arith.constant 0 : index
    %c0_0 = arith.constant 0 : index
    %0 = vector.load %arg1[%c0, %c0_0] : memref<16x72xbf16, #tpu.memory_space<vmem>>, vector<16x72xbf16>
    %c0_1 = arith.constant 0 : index
    %c0_2 = arith.constant 0 : index
    %1 = vector.load %arg2[%c0_1, %c0_2] : memref<72x128xbf16, #tpu.memory_space<vmem>>, vector<72x128xbf16>
    %cst = arith.constant dense<0.000000e+00> : vector<16x128xf32>
    %2 = tpu.matmul %0, %1, %cst {dimension_numbers = #tpu.dot_dimension_numbers<[1], [0], [0], [1], [0, 0, 1, 1], [], []>} : vector<16x72xbf16>, vector<72x128xbf16>, vector<16x128xf32> -> vector<16x128xf32>
    %3 = arith.truncf %2 : vector<16x128xf32> to vector<16x128xbf16>
    %c0_3 = arith.constant 0 : index
    %c0_4 = arith.constant 0 : index
    %4 = vector.load %arg3[%c0_3, %c0_4] : memref<16x128xbf16, #tpu.memory_space<vmem>>, vector<16x128xbf16>
    tpu.vector_store %arg3[%c0_3, %c0_4], %3 {strides = array<i32>} : memref<16x128xbf16, #tpu.memory_space<vmem>>, vector<16x128xbf16>,
    %c128_i32 = arith.constant 128 : i32
    %5 = arith.muli %arg0, %c128_i32 : i32
    %6 = tpu.iota {dimensions = array<i32: 1>} : vector<1x128xi32>
    %7 = vector.broadcast %5 : i32 to vector<1x128xi32>
    %8 = arith.addi %7, %6 : vector<1x128xi32>
    %c32_i32 = arith.constant 32 : i32
    %9 = vector.broadcast %c32_i32 : i32 to vector<1x128xi32>
    %10 = arith.cmpi slt, %8, %9 : vector<1x128xi32>
    %c128_i32_5 = arith.constant 128 : i32
    %11 = arith.muli %arg0, %c128_i32_5 : i32
    %c32_i32_6 = arith.constant 32 : i32
    %12 = arith.subi %c32_i32_6, %11 : i32
    %c128_i32_7 = arith.constant 128 : i32
    %13 = arith.minsi %12, %c128_i32_7 : i32
    %c1_i32 = arith.constant 1 : i32
    %14 = arith.maxsi %13, %c1_i32 : i32
    %15 = arith.sitofp %14 : i32 to f32
    %cst_8 = arith.constant 1.000000e+00 : f32
    %16 = arith.divf %cst_8, %15 : f32
    %cst_9 = arith.constant 0.000000e+00 : f32
    %17 = vector.shape_cast %10 : vector<1x128xi1> to vector<1x128xi1>
    %18 = vector.broadcast %17 : vector<1x128xi1> to vector<16x128xi1>
    %19 = vector.broadcast %cst_9 : f32 to vector<16x128xf32>
    %20 = arith.select %18, %2, %19 : vector<16x128xi1>, vector<16x128xf32>
    %cst_10 = arith.constant dense<0.000000e+00> : vector<16xf32>
    %21 = vector.multi_reduction <add>, %20, %cst_10 [1] : vector<16x128xf32> to vector<16xf32>
    %22 = vector.shape_cast %21 : vector<16xf32> to vector<16x1xf32>
    %23 = vector.broadcast %16 : f32 to vector<16x1xf32>
    %24 = arith.mulf %22, %23 : vector<16x1xf32>
    %25 = vector.broadcast %24 : vector<16x1xf32> to vector<16x128xf32>
    %26 = arith.subf %2, %25 : vector<16x128xf32>
    %cst_11 = arith.constant 0.000000e+00 : f32
    %27 = vector.shape_cast %10 : vector<1x128xi1> to vector<1x128xi1>
    %28 = vector.broadcast %27 : vector<1x128xi1> to vector<16x128xi1>
    %29 = vector.broadcast %cst_11 : f32 to vector<16x128xf32>
    %30 = arith.select %28, %26, %29 : vector<16x128xi1>, vector<16x128xf32>
    %31 = arith.mulf %30, %30 : vector<16x128xf32>
    %cst_12 = arith.constant dense<0.000000e+00> : vector<16xf32>
    %32 = vector.multi_reduction <add>, %31, %cst_12 [1] : vector<16x128xf32> to vector<16xf32>
    %33 = vector.shape_cast %32 : vector<16xf32> to vector<16x1xf32>
    %34 = vector.shape_cast %24 : vector<16x1xf32> to vector<1x16x1xf32>
    %c0_13 = arith.constant 0 : index
    %c0_14 = arith.constant 0 : index
    %c0_15 = arith.constant 0 : index
    %35 = vector.load %arg4[%c0_13, %c0_14, %c0_15] : memref<1x16x1xf32, #tpu.memory_space<vmem>>, vector<1x16x1xf32>
    tpu.vector_store %arg4[%c0_13, %c0_14, %c0_15], %34 {strides = array<i32>} : memref<1x16x1xf32, #tpu.memory_space<vmem>>, vector<1x16x1xf32>,
    %36 = vector.shape_cast %33 : vector<16x1xf32> to vector<1x16x1xf32>
    %c0_16 = arith.constant 0 : index
    %c0_17 = arith.constant 0 : index
    %c0_18 = arith.constant 0 : index
    %37 = vector.load %arg5[%c0_16, %c0_17, %c0_18] : memref<1x16x1xf32, #tpu.memory_space<vmem>>, vector<1x16x1xf32>
    tpu.vector_store %arg5[%c0_16, %c0_17, %c0_18], %36 {strides = array<i32>} : memref<1x16x1xf32, #tpu.memory_space<vmem>>, vector<1x16x1xf32>,
    return
  }
  func.func @transform_0(%arg0: i32) -> (i32, i32) {
    %c0_i32 = arith.constant 0 : i32
    %c0_i32_0 = arith.constant 0 : i32
    %c0_i32_1 = arith.constant 0 : i32
    return %c0_i32, %c0_i32_0 : i32, i32
  }
  func.func @transform_1(%arg0: i32) -> (i32, i32) {
    %c0_i32 = arith.constant 0 : i32
    %c0_i32_0 = arith.constant 0 : i32
    return %c0_i32, %arg0 : i32, i32
  }
  func.func @transform_2(%arg0: i32) -> (i32, i32) {
    %c0_i32 = arith.constant 0 : i32
    %c0_i32_0 = arith.constant 0 : i32
    return %c0_i32, %arg0 : i32, i32
  }
  func.func @transform_3(%arg0: i32) -> (i32, i32, i32) {
    %c0_i32 = arith.constant 0 : i32
    %c0_i32_0 = arith.constant 0 : i32
    %c0_i32_1 = arith.constant 0 : i32
    return %arg0, %c0_i32, %c0_i32_0 : i32, i32, i32
  }
  func.func @transform_4(%arg0: i32) -> (i32, i32, i32) {
    %c0_i32 = arith.constant 0 : i32
    %c0_i32_0 = arith.constant 0 : i32
    %c0_i32_1 = arith.constant 0 : i32
    return %arg0, %c0_i32, %c0_i32_0 : i32, i32, i32
  }
}

module attributes {stable_mosaic.version = 11 : i64} {
  func.func @maxpool_kernel(%arg0: i32, %arg1: memref<9x16x128xbf16, #tpu.memory_space<vmem>>, %arg2: memref<16x128xbf16, #tpu.memory_space<vmem>>) attributes {dimension_semantics = [#tpu.dimension_semantics<parallel>], iteration_bounds = array<i64: 1>, scalar_prefetch = 0 : i64, scratch_operands = 0 : i64, tpu.core_type = #tpu.core_type<tc>, window_params = [{transform_indices = @transform_0, window_bounds = array<i64: 9, 16, 128>}, {transform_indices = @transform_1, window_bounds = array<i64: 16, 128>}]} {
    %c0 = arith.constant 0 : index
    %c0_0 = arith.constant 0 : index
    %c0_1 = arith.constant 0 : index
    %0 = vector.load %arg1[%c0, %c0_0, %c0_1] : memref<9x16x128xbf16, #tpu.memory_space<vmem>>, vector<9x16x128xbf16>
    %cst = arith.constant dense<0xFF80> : vector<16x128xbf16>
    %1 = vector.multi_reduction <maximumf>, %0, %cst [0] : vector<9x16x128xbf16> to vector<16x128xbf16>
    %c0_2 = arith.constant 0 : index
    %c0_3 = arith.constant 0 : index
    %2 = vector.load %arg2[%c0_2, %c0_3] : memref<16x128xbf16, #tpu.memory_space<vmem>>, vector<16x128xbf16>
    tpu.vector_store %arg2[%c0_2, %c0_3], %1 {strides = array<i32>} : memref<16x128xbf16, #tpu.memory_space<vmem>>, vector<16x128xbf16>,
    return
  }
  func.func @transform_0(%arg0: i32) -> (i32, i32, i32) {
    %c0_i32 = arith.constant 0 : i32
    %c0_i32_0 = arith.constant 0 : i32
    %c0_i32_1 = arith.constant 0 : i32
    return %c0_i32, %c0_i32_0, %arg0 : i32, i32, i32
  }
  func.func @transform_1(%arg0: i32) -> (i32, i32) {
    %c0_i32 = arith.constant 0 : i32
    %c0_i32_0 = arith.constant 0 : i32
    return %c0_i32, %arg0 : i32, i32
  }
}

module attributes {stable_mosaic.version = 11 : i64} {
  func.func @conv_stats_kernel(%arg0: i32, %arg1: memref<16x288xbf16, #tpu.memory_space<vmem>>, %arg2: memref<288x128xbf16, #tpu.memory_space<vmem>>, %arg3: memref<16x128xbf16, #tpu.memory_space<vmem>>, %arg4: memref<1x16x1xf32, #tpu.memory_space<vmem>>, %arg5: memref<1x16x1xf32, #tpu.memory_space<vmem>>) attributes {dimension_semantics = [#tpu.dimension_semantics<parallel>], iteration_bounds = array<i64: 1>, scalar_prefetch = 0 : i64, scratch_operands = 0 : i64, tpu.core_type = #tpu.core_type<tc>, window_params = [{pipeline_mode = #tpu.pipeline_mode<synchronous>, transform_indices = @transform_0, window_bounds = array<i64: 16, 288>}, {transform_indices = @transform_1, window_bounds = array<i64: 288, 128>}, {transform_indices = @transform_2, window_bounds = array<i64: 16, 128>}, {transform_indices = @transform_3, window_bounds = array<i64: 1, 16, 1>}, {transform_indices = @transform_4, window_bounds = array<i64: 1, 16, 1>}]} {
    %c0 = arith.constant 0 : index
    %c0_0 = arith.constant 0 : index
    %0 = vector.load %arg1[%c0, %c0_0] : memref<16x288xbf16, #tpu.memory_space<vmem>>, vector<16x288xbf16>
    %c0_1 = arith.constant 0 : index
    %c0_2 = arith.constant 0 : index
    %1 = vector.load %arg2[%c0_1, %c0_2] : memref<288x128xbf16, #tpu.memory_space<vmem>>, vector<288x128xbf16>
    %cst = arith.constant dense<0.000000e+00> : vector<16x128xf32>
    %2 = tpu.matmul %0, %1, %cst {dimension_numbers = #tpu.dot_dimension_numbers<[1], [0], [0], [1], [0, 0, 1, 1], [], []>} : vector<16x288xbf16>, vector<288x128xbf16>, vector<16x128xf32> -> vector<16x128xf32>
    %3 = arith.truncf %2 : vector<16x128xf32> to vector<16x128xbf16>
    %c0_3 = arith.constant 0 : index
    %c0_4 = arith.constant 0 : index
    %4 = vector.load %arg3[%c0_3, %c0_4] : memref<16x128xbf16, #tpu.memory_space<vmem>>, vector<16x128xbf16>
    tpu.vector_store %arg3[%c0_3, %c0_4], %3 {strides = array<i32>} : memref<16x128xbf16, #tpu.memory_space<vmem>>, vector<16x128xbf16>,
    %c128_i32 = arith.constant 128 : i32
    %5 = arith.muli %arg0, %c128_i32 : i32
    %6 = tpu.iota {dimensions = array<i32: 1>} : vector<1x128xi32>
    %7 = vector.broadcast %5 : i32 to vector<1x128xi32>
    %8 = arith.addi %7, %6 : vector<1x128xi32>
    %c32_i32 = arith.constant 32 : i32
    %9 = vector.broadcast %c32_i32 : i32 to vector<1x128xi32>
    %10 = arith.cmpi slt, %8, %9 : vector<1x128xi32>
    %c128_i32_5 = arith.constant 128 : i32
    %11 = arith.muli %arg0, %c128_i32_5 : i32
    %c32_i32_6 = arith.constant 32 : i32
    %12 = arith.subi %c32_i32_6, %11 : i32
    %c128_i32_7 = arith.constant 128 : i32
    %13 = arith.minsi %12, %c128_i32_7 : i32
    %c1_i32 = arith.constant 1 : i32
    %14 = arith.maxsi %13, %c1_i32 : i32
    %15 = arith.sitofp %14 : i32 to f32
    %cst_8 = arith.constant 1.000000e+00 : f32
    %16 = arith.divf %cst_8, %15 : f32
    %cst_9 = arith.constant 0.000000e+00 : f32
    %17 = vector.shape_cast %10 : vector<1x128xi1> to vector<1x128xi1>
    %18 = vector.broadcast %17 : vector<1x128xi1> to vector<16x128xi1>
    %19 = vector.broadcast %cst_9 : f32 to vector<16x128xf32>
    %20 = arith.select %18, %2, %19 : vector<16x128xi1>, vector<16x128xf32>
    %cst_10 = arith.constant dense<0.000000e+00> : vector<16xf32>
    %21 = vector.multi_reduction <add>, %20, %cst_10 [1] : vector<16x128xf32> to vector<16xf32>
    %22 = vector.shape_cast %21 : vector<16xf32> to vector<16x1xf32>
    %23 = vector.broadcast %16 : f32 to vector<16x1xf32>
    %24 = arith.mulf %22, %23 : vector<16x1xf32>
    %25 = vector.broadcast %24 : vector<16x1xf32> to vector<16x128xf32>
    %26 = arith.subf %2, %25 : vector<16x128xf32>
    %cst_11 = arith.constant 0.000000e+00 : f32
    %27 = vector.shape_cast %10 : vector<1x128xi1> to vector<1x128xi1>
    %28 = vector.broadcast %27 : vector<1x128xi1> to vector<16x128xi1>
    %29 = vector.broadcast %cst_11 : f32 to vector<16x128xf32>
    %30 = arith.select %28, %26, %29 : vector<16x128xi1>, vector<16x128xf32>
    %31 = arith.mulf %30, %30 : vector<16x128xf32>
    %cst_12 = arith.constant dense<0.000000e+00> : vector<16xf32>
    %32 = vector.multi_reduction <add>, %31, %cst_12 [1] : vector<16x128xf32> to vector<16xf32>
    %33 = vector.shape_cast %32 : vector<16xf32> to vector<16x1xf32>
    %34 = vector.shape_cast %24 : vector<16x1xf32> to vector<1x16x1xf32>
    %c0_13 = arith.constant 0 : index
    %c0_14 = arith.constant 0 : index
    %c0_15 = arith.constant 0 : index
    %35 = vector.load %arg4[%c0_13, %c0_14, %c0_15] : memref<1x16x1xf32, #tpu.memory_space<vmem>>, vector<1x16x1xf32>
    tpu.vector_store %arg4[%c0_13, %c0_14, %c0_15], %34 {strides = array<i32>} : memref<1x16x1xf32, #tpu.memory_space<vmem>>, vector<1x16x1xf32>,
    %36 = vector.shape_cast %33 : vector<16x1xf32> to vector<1x16x1xf32>
    %c0_16 = arith.constant 0 : index
    %c0_17 = arith.constant 0 : index
    %c0_18 = arith.constant 0 : index
    %37 = vector.load %arg5[%c0_16, %c0_17, %c0_18] : memref<1x16x1xf32, #tpu.memory_space<vmem>>, vector<1x16x1xf32>
    tpu.vector_store %arg5[%c0_16, %c0_17, %c0_18], %36 {strides = array<i32>} : memref<1x16x1xf32, #tpu.memory_space<vmem>>, vector<1x16x1xf32>,
    return
  }
  func.func @transform_0(%arg0: i32) -> (i32, i32) {
    %c0_i32 = arith.constant 0 : i32
    %c0_i32_0 = arith.constant 0 : i32
    %c0_i32_1 = arith.constant 0 : i32
    return %c0_i32, %c0_i32_0 : i32, i32
  }
  func.func @transform_1(%arg0: i32) -> (i32, i32) {
    %c0_i32 = arith.constant 0 : i32
    %c0_i32_0 = arith.constant 0 : i32
    return %c0_i32, %arg0 : i32, i32
  }
  func.func @transform_2(%arg0: i32) -> (i32, i32) {
    %c0_i32 = arith.constant 0 : i32
    %c0_i32_0 = arith.constant 0 : i32
    return %c0_i32, %arg0 : i32, i32
  }
  func.func @transform_3(%arg0: i32) -> (i32, i32, i32) {
    %c0_i32 = arith.constant 0 : i32
    %c0_i32_0 = arith.constant 0 : i32
    %c0_i32_1 = arith.constant 0 : i32
    return %arg0, %c0_i32, %c0_i32_0 : i32, i32, i32
  }
  func.func @transform_4(%arg0: i32) -> (i32, i32, i32) {
    %c0_i32 = arith.constant 0 : i32
    %c0_i32_0 = arith.constant 0 : i32
    %c0_i32_1 = arith.constant 0 : i32
    return %arg0, %c0_i32, %c0_i32_0 : i32, i32, i32
  }
}

</mosaic_0001>

<llo_original>
// kernel: stem_block_forward.10
$region0: #{stem_block_forward.10}
  #allocation0 [shape = 'u32[]', space=smem, size = 0x4, offset = 0x4, fixed_abs, tag = 'smem constant byte address 0x4 - core index']
  #allocation1 [shape = 'u32[144,128]{1,0:T(1,128)}', space=vmem, size = 0x12000, scoped, tag = 'internal scratch']
  %s0 = inlined_call_operand.vmem [shape: bf16[16,128], index: 0, kind: input, shape index: {}]
  %s1 = inlined_call_operand.vmem [shape: f32[16,1], index: 1, kind: input, shape index: {}]
  %s2 = inlined_call_operand.vmem [shape: f32[16,1], index: 2, kind: input, shape index: {}]
  %s3 = inlined_call_operand.vmem [shape: bf16[16,128], index: 3, kind: output, shape index: {}]
  %s4 = sld [smem:[#allocation0]]
  $region22: #{stem_block_forward.10} parent=0
    _
  %s6 = ssub.s32 1, %s4
  %s7 = scalar_select 0, %s6, %s4
  // Predicated region
  $region2: #{stem_block_forward.10} parent=0 // pred_check
    _
  $region3: #{stem_block_forward.10} parent=0 // pred_check_branch
    %9 = sbr.rel (0) target = $region5
  $region4: #{stem_block_forward.10} parent=0 // pred_region
    _
  $region5: #{stem_block_forward.10} parent=0 // pred_fallthru
    _
  // Predicated region
  $region6: #{stem_block_forward.10} parent=0 // pred_check
    _
  $region7: #{stem_block_forward.10} parent=0 // pred_check_branch
    %11 = sbr.rel (0) target = $region9
  $region8: #{stem_block_forward.10} parent=0 // pred_region
    _
  $region9: #{stem_block_forward.10} parent=0 // pred_fallthru
    _
  // Predicated region
  $region10: #{stem_block_forward.10} parent=0 // pred_check
    _
  $region11: #{stem_block_forward.10} parent=0 // pred_check_branch
    %13 = sbr.rel (0) target = $region13
  $region12: #{stem_block_forward.10} parent=0 // pred_region
    _
  $region13: #{stem_block_forward.10} parent=0 // pred_fallthru
    _
  %v14 = vld [vmem:[%s0] sm:$0xf]
  %v15 = vld [vmem:[%s0 + $0x4] sm:$0xf]
  %v16 = vunpack.c.l.bf16 %v14
  %v17 = vunpack.c.l.bf16 %v15
  %v18 = vld [vmem:[%s1] sm:$0xff]
  %v19 = vld [vmem:[%s1 + $0x8] sm:$0xff]
  %21 = vset.pattern.permute.xlu0 0
  %22 = vperm.xlu0 %21, %v18
  %v23 = vpop.permute.xlu0 %22
  %26 = vset.pattern.permute.xlu0 0
  %27 = vperm.xlu0 %26, %v19
  %v28 = vpop.permute.xlu0 %27
  %v30 = vmul.f32 %v16, %v23
  %v31 = vmul.f32 %v17, %v28
  %v32 = vld [vmem:[%s2] sm:$0xff]
  %v33 = vld [vmem:[%s2 + $0x8] sm:$0xff]
  %35 = vset.pattern.permute.xlu0 0
  %36 = vperm.xlu0 %35, %v32
  %v37 = vpop.permute.xlu0 %36
  %40 = vset.pattern.permute.xlu0 0
  %41 = vperm.xlu0 %40, %v33
  %v42 = vpop.permute.xlu0 %41
  %v44 = vadd.f32 %v30, %v37
  %v45 = vadd.f32 %v31, %v42
  %v46 = vmax.f32 %v44, 0.0
  %v47 = vmax.f32 %v45, 0.0
  %v48 = vpack.c.bf16 %v47, %v46
  %v50 = vunpack.c.l.b16 %v48
  %v51 = vunpack.c.h.b16 %v48
  %v52 = vpack.c.b16 %v50, %v50
  %v53 = vpack.c.b16 %v51, %v51
  %56 = vst [vmem:[%s3] sm:$0xf] %v52
  %57 = vst [vmem:[%s3 + $0x4] sm:$0xf] %v53
  // Predicated region
  $region14: #{stem_block_forward.10} parent=0 // pred_check
    _
  $region15: #{stem_block_forward.10} parent=0 // pred_check_branch
    %59 = sbr.rel (0) target = $region17
  $region16: #{stem_block_forward.10} parent=0 // pred_region
    _
  $region17: #{stem_block_forward.10} parent=0 // pred_fallthru
    _
  // Predicated region
  $region18: #{stem_block_forward.10} parent=0 // pred_check
    _
  $region19: #{stem_block_forward.10} parent=0 // pred_check_branch
    %61 = sbr.rel (0) target = $region21
  $region20: #{stem_block_forward.10} parent=0 // pred_region
    _
  $region21: #{stem_block_forward.10} parent=0 // pred_fallthru
    _

// kernel: stem_block_forward.9
$region0: #{stem_block_forward.9}
  #allocation0 [shape = 'u32[]', space=smem, size = 0x4, offset = 0x4, fixed_abs, tag = 'smem constant byte address 0x4 - core index']
  #allocation1 [shape = 'u32[144,128]{1,0:T(1,128)}', space=vmem, size = 0x12000, scoped, tag = 'internal scratch']
  %s0 = inlined_call_operand.vmem [shape: bf16[16,27], index: 0, kind: input, shape index: {}]
  %s1 = inlined_call_operand.vmem [shape: bf16[27,128], index: 1, kind: input, shape index: {}]
  %s2 = inlined_call_operand.vmem [shape: bf16[16,128], index: 2, kind: output, shape index: {0}]
  %s3 = inlined_call_operand.vmem [shape: f32[1,16,1], index: 3, kind: output, shape index: {1}]
  %s4 = inlined_call_operand.vmem [shape: f32[1,16,1], index: 4, kind: output, shape index: {2}]
  %5 = xla_tuple %s2, %s3, %s4
  %s6 = sld [smem:[#allocation0]]
  $region34: #{stem_block_forward.9} parent=0
    _
  %s8 = ssub.s32 1, %s6
  %s9 = scalar_select 0, %s8, %s6
  // Predicated region
  $region2: #{stem_block_forward.9} parent=0 // pred_check
    _
  $region3: #{stem_block_forward.9} parent=0 // pred_check_branch
    %11 = sbr.rel (0) target = $region5
  $region4: #{stem_block_forward.9} parent=0 // pred_region
    _
  $region5: #{stem_block_forward.9} parent=0 // pred_fallthru
    _
  // Predicated region
  $region6: #{stem_block_forward.9} parent=0 // pred_check
    _
  $region7: #{stem_block_forward.9} parent=0 // pred_check_branch
    %13 = sbr.rel (0) target = $region9
  $region8: #{stem_block_forward.9} parent=0 // pred_region
    _
  $region9: #{stem_block_forward.9} parent=0 // pred_fallthru
    _
  %v15 = vld [vmem:[%s0] sm:$0xf]
  %v16 = vld [vmem:[%s0 + $0x4] sm:$0xf]
  %v17 = vld [vmem:[%s1] sm:$0xf]
  %v18 = vld [vmem:[%s1 + $0x4] sm:$0xf]
  %v19 = vld [vmem:[%s1 + $0x8] sm:$0xf]
  %v20 = vld [vmem:[%s1 + $0xc] sm:$0x3]
  %v23 = vunpack.c.l.b16 %v15
  %v24 = vunpack.c.l.b16 %v16
  %v25 = vpack.c.b16 %v24, %v23
  %v30 = vunpack.c.l.b16 %v17
  %v31 = vunpack.c.l.b16 %v18
  %v32 = vunpack.c.l.b16 %v19
  %v33 = vunpack.c.l.b16 %v20
  %v34 = vpack.c.b16 %v31, %v30
  %v35 = vpack.c.b16 %v33, %v32
  %vm37 = vcmask 220160
  %v39 = vsel %vm37, %v25, 0
  %vm41 = vcmask 1044480
  %vm42 = vcmask 1045504
  %v43 = vsel %vm41, 4294967295, 65535
  %v44 = vsel %vm42, %v43, 0
  %v46 = vand.u32 %v35, %v44
  %48 = vmatprep.subr.bf16.mxu0 0
  %49 = vmatpush1.bf16.msra.mxu0 %v34
  %50 = vmatprep.subr.bf16.mxu0 0
  %51 = vmatpush1.bf16.msra.mxu0 %v46
  %52 = vmatprep.subr.bf16.mxu0 0
  %53 = vmatpush1.bf16.msra.mxu0 0
  %54 = vmatprep.subr.bf16.mxu0 0
  %55 = vmatpush1.bf16.msra.mxu0 0
  %56 = vmatprep.subr.bf16.mxu0 0
  %57 = vmatpush1.bf16.msra.mxu0 0
  %58 = vmatprep.subr.bf16.mxu0 0
  %59 = vmatpush1.bf16.msra.mxu0 0
  %60 = vmatprep.subr.bf16.mxu0 0
  %61 = vmatpush1.bf16.msra.mxu0 0
  %62 = vmatprep.subr.bf16.mxu0 0
  %63 = vmatpush1.bf16.msra.mxu0 0
  %64 = vmatprep.subr.bf16.mxu0 0
  %65 = vmatpush1.bf16.msra.mxu0 0
  %66 = vmatprep.subr.bf16.mxu0 0
  %67 = vmatpush1.bf16.msra.mxu0 0
  %68 = vmatprep.subr.bf16.mxu0 0
  %69 = vmatpush1.bf16.msra.mxu0 0
  %70 = vmatprep.subr.bf16.mxu0 0
  %71 = vmatpush1.bf16.msra.mxu0 0
  %72 = vmatprep.subr.bf16.mxu0 0
  %73 = vmatpush1.bf16.msra.mxu0 0
  %74 = vmatprep.subr.bf16.mxu0 0
  %75 = vmatpush1.bf16.msra.mxu0 0
  %76 = vmatprep.subr.bf16.mxu0 0
  %77 = vmatpush1.bf16.msra.mxu0 0
  %78 = vmatprep.subr.bf16.mxu0 0
  %79 = vmatpush1.bf16.msra.mxu0 0
  %80 = vmatprep.mubr.bf16.mxu0 0
  %81 = vmatmul.mubr.bf16.gmra.mrb[0].mxu0 %v39
  %v82 = vpop.f32.mrb[0].mxu0
  %v83 = vadd.f32 0.0, %v82
  %v84 = vpop.f32.mrb[0].mxu0
  %v85 = vpop.f32.mrb[0].mxu0
  %v86 = vadd.f32 0.0, %v85
  %v87 = vpop.f32.mrb[0].mxu0
  %88 = vdwg.mxu0
  %v89 = vpack.c.bf16 %v86, %v83
  %v91 = vunpack.c.l.b16 %v89
  %v92 = vunpack.c.h.b16 %v89
  %v93 = vpack.c.b16 %v91, %v91
  %v94 = vpack.c.b16 %v92, %v92
  %97 = vst [vmem:[%s2] sm:$0xf] %v93
  %98 = vst [vmem:[%s2 + $0x4] sm:$0xf] %v94
  %s99 = smul.u32 0, 128
  %v100 = vlaneseq
  %v101 = vand.u32 %v100, 127
  %v102 = vstv %s99
  %v103 = vadd.s32 %v102, %v101
  %vm104 = vcmp.lt.s32.totalorder %v103, 128
  %s105 = ssub.s32 128, %s99
  %p106 = scmp.lt.s32.totalorder %s105, 128
  %s107 = scalar_select %p106, %s105, 128
  %p108 = scmp.gt.s32.totalorder %s107, 1
  %s109 = scalar_select %p108, %s107, 1
  %s110 = scvt.s32.f32 %s109
  %v111 = vstv %s110
  %v112 = vrcp.pop %v111
  %s113 = vtos %v112
  %v114 = vsel %vm104, 1, 0
  %vm115 = vcmp.eq.s32.totalorder %v114, 1
  %v116 = vsel %vm115, %v83, 0.0
  %v117 = vsel %vm115, %v86, 0.0
  %118 = vadd.xlane.f32.xlu0 %v116
  %v119 = vpop.xlane.xlu0 %118
  %120 = vadd.xlane.f32.xlu0 %v117
  %v121 = vpop.xlane.xlu0 %120
  %v122 = vstv %s113
  %v123 = vmul.f32 %v119, %v122
  %v124 = vmul.f32 %v121, %v122
  %v125 = vsub.f32 %v83, %v123
  %v126 = vsub.f32 %v86, %v124
  %v127 = vsel %vm115, %v125, 0.0
  %v128 = vsel %vm115, %v126, 0.0
  %v129 = vmul.f32 %v127, %v127
  %v130 = vmul.f32 %v128, %v128
  %131 = vadd.xlane.f32.xlu0 %v129
  %v132 = vpop.xlane.xlu0 %131
  %133 = vadd.xlane.f32.xlu0 %v130
  %v134 = vpop.xlane.xlu0 %133
  %vm135 = vcmask 7168
  %136 = vst.msk [vmem:[%s3] sm:$0xff] %vm135, %v123
  %137 = vst.msk [vmem:[%s3 + $0x8] sm:$0xff] %vm135, %v124
  %138 = vst.msk [vmem:[%s4] sm:$0xff] %vm135, %v132
  %139 = vst.msk [vmem:[%s4 + $0x8] sm:$0xff] %vm135, %v134
  // Predicated region
  $region10: #{stem_block_forward.9} parent=0 // pred_check
    _
  $region11: #{stem_block_forward.9} parent=0 // pred_check_branch
    %141 = sbr.rel (0) target = $region13
  $region12: #{stem_block_forward.9} parent=0 // pred_region
    _
  $region13: #{stem_block_forward.9} parent=0 // pred_fallthru
    _
  // Predicated region
  $region14: #{stem_block_forward.9} parent=0 // pred_check
    _
  $region15: #{stem_block_forward.9} parent=0 // pred_check_branch
    %143 = sbr.rel (0) target = $region17
  $region16: #{stem_block_forward.9} parent=0 // pred_region
    _
  $region17: #{stem_block_forward.9} parent=0 // pred_fallthru
    _
  // Predicated region
  $region18: #{stem_block_forward.9} parent=0 // pred_check
    _
  $region19: #{stem_block_forward.9} parent=0 // pred_check_branch
    %145 = sbr.rel (0) target = $region21
  $region20: #{stem_block_forward.9} parent=0 // pred_region
    _
  $region21: #{stem_block_forward.9} parent=0 // pred_fallthru
    _
  // Predicated region
  $region22: #{stem_block_forward.9} parent=0 // pred_check
    _
  $region23: #{stem_block_forward.9} parent=0 // pred_check_branch
    %147 = sbr.rel (0) target = $region25
  $region24: #{stem_block_forward.9} parent=0 // pred_region
    _
  $region25: #{stem_block_forward.9} parent=0 // pred_fallthru
    _
  // Predicated region
  $region26: #{stem_block_forward.9} parent=0 // pred_check
    _
  $region27: #{stem_block_forward.9} parent=0 // pred_check_branch
    %149 = sbr.rel (0) target = $region29
  $region28: #{stem_block_forward.9} parent=0 // pred_region
    _
  $region29: #{stem_block_forward.9} parent=0 // pred_fallthru
    _
  // Predicated region
  $region30: #{stem_block_forward.9} parent=0 // pred_check
    _
  $region31: #{stem_block_forward.9} parent=0 // pred_check_branch
    %151 = sbr.rel (0) target = $region33
  $region32: #{stem_block_forward.9} parent=0 // pred_region
    _
  $region33: #{stem_block_forward.9} parent=0 // pred_fallthru
    _

// kernel: stem_block_forward.11
$region0: #{stem_block_forward.11}
  #allocation0 [shape = 'u32[]', space=smem, size = 0x4, offset = 0x4, fixed_abs, tag = 'smem constant byte address 0x4 - core index']
  #allocation1 [shape = 'u32[144,128]{1,0:T(1,128)}', space=vmem, size = 0x12000, scoped, tag = 'internal scratch']
  %s0 = inlined_call_operand.vmem [shape: bf16[8,16], index: 0, kind: input, shape index: {}]
  %s1 = inlined_call_operand.vmem [shape: bf16[16,128], index: 1, kind: input, shape index: {}]
  %s2 = inlined_call_operand.vmem [shape: bf16[8,128], index: 2, kind: output, shape index: {0}]
  %s3 = inlined_call_operand.vmem [shape: f32[1,8,1], index: 3, kind: output, shape index: {1}]
  %s4 = inlined_call_operand.vmem [shape: f32[1,8,1], index: 4, kind: output, shape index: {2}]
  %5 = xla_tuple %s2, %s3, %s4
  %s6 = sld [smem:[#allocation0]]
  $region34: #{stem_block_forward.11} parent=0
    _
  %s8 = ssub.s32 1, %s6
  %s9 = scalar_select 0, %s8, %s6
  // Predicated region
  $region2: #{stem_block_forward.11} parent=0 // pred_check
    _
  $region3: #{stem_block_forward.11} parent=0 // pred_check_branch
    %11 = sbr.rel (0) target = $region5
  $region4: #{stem_block_forward.11} parent=0 // pred_region
    _
  $region5: #{stem_block_forward.11} parent=0 // pred_fallthru
    _
  // Predicated region
  $region6: #{stem_block_forward.11} parent=0 // pred_check
    _
  $region7: #{stem_block_forward.11} parent=0 // pred_check_branch
    %13 = sbr.rel (0) target = $region9
  $region8: #{stem_block_forward.11} parent=0 // pred_region
    _
  $region9: #{stem_block_forward.11} parent=0 // pred_fallthru
    _
  %v15 = vld [vmem:[%s0] sm:$0xf]
  %v16 = vld [vmem:[%s1] sm:$0xf]
  %v17 = vld [vmem:[%s1 + $0x4] sm:$0xf]
  %v20 = vunpack.c.l.b16 %v16
  %v21 = vunpack.c.l.b16 %v17
  %v22 = vpack.c.b16 %v21, %v20
  %vm24 = vcmask 130048
  %v26 = vsel %vm24, %v15, 0
  %28 = vmatprep.subr.bf16.mxu0 0
  %29 = vmatpush1.bf16.msra.mxu0 %v22
  %30 = vmatprep.subr.bf16.mxu0 0
  %31 = vmatpush1.bf16.msra.mxu0 0
  %32 = vmatprep.subr.bf16.mxu0 0
  %33 = vmatpush1.bf16.msra.mxu0 0
  %34 = vmatprep.subr.bf16.mxu0 0
  %35 = vmatpush1.bf16.msra.mxu0 0
  %36 = vmatprep.subr.bf16.mxu0 0
  %37 = vmatpush1.bf16.msra.mxu0 0
  %38 = vmatprep.subr.bf16.mxu0 0
  %39 = vmatpush1.bf16.msra.mxu0 0
  %40 = vmatprep.subr.bf16.mxu0 0
  %41 = vmatpush1.bf16.msra.mxu0 0
  %42 = vmatprep.subr.bf16.mxu0 0
  %43 = vmatpush1.bf16.msra.mxu0 0
  %44 = vmatprep.subr.bf16.mxu0 0
  %45 = vmatpush1.bf16.msra.mxu0 0
  %46 = vmatprep.subr.bf16.mxu0 0
  %47 = vmatpush1.bf16.msra.mxu0 0
  %48 = vmatprep.subr.bf16.mxu0 0
  %49 = vmatpush1.bf16.msra.mxu0 0
  %50 = vmatprep.subr.bf16.mxu0 0
  %51 = vmatpush1.bf16.msra.mxu0 0
  %52 = vmatprep.subr.bf16.mxu0 0
  %53 = vmatpush1.bf16.msra.mxu0 0
  %54 = vmatprep.subr.bf16.mxu0 0
  %55 = vmatpush1.bf16.msra.mxu0 0
  %56 = vmatprep.subr.bf16.mxu0 0
  %57 = vmatpush1.bf16.msra.mxu0 0
  %58 = vmatprep.subr.bf16.mxu0 0
  %59 = vmatpush1.bf16.msra.mxu0 0
  %60 = vmatprep.mubr.bf16.mxu0 0
  %61 = vmatmul.mubr.bf16.gmra.mrb[0].mxu0 %v26
  %v62 = vpop.f32.mrb[0].mxu0
  %v63 = vadd.f32 0.0, %v62
  %v64 = vpop.f32.mrb[0].mxu0
  %v65 = vpop.f32.mrb[0].mxu0
  %v66 = vpop.f32.mrb[0].mxu0
  %67 = vdwg.mxu0
  %v68 = vpack.c.bf16 %v63, %v63
  %69 = vst [vmem:[%s2] sm:$0xf] %v68
  %s70 = smul.u32 0, 128
  %v71 = vlaneseq
  %v72 = vand.u32 %v71, 127
  %v73 = vstv %s70
  %v74 = vadd.s32 %v73, %v72
  %vm75 = vcmp.lt.s32.totalorder %v74, 128
  %s76 = ssub.s32 128, %s70
  %p77 = scmp.lt.s32.totalorder %s76, 128
  %s78 = scalar_select %p77, %s76, 128
  %p79 = scmp.gt.s32.totalorder %s78, 1
  %s80 = scalar_select %p79, %s78, 1
  %s81 = scvt.s32.f32 %s80
  %v82 = vstv %s81
  %v83 = vrcp.pop %v82
  %s84 = vtos %v83
  %v85 = vsel %vm75, 1, 0
  %vm86 = vcmp.eq.s32.totalorder %v85, 1
  %v87 = vsel %vm86, %v63, 0.0
  %88 = vadd.xlane.f32.xlu0 %v87
  %v89 = vpop.xlane.xlu0 %88
  %v90 = vstv %s84
  %v91 = vmul.f32 %v89, %v90
  %v92 = vsub.f32 %v63, %v91
  %v93 = vsel %vm86, %v92, 0.0
  %v94 = vmul.f32 %v93, %v93
  %95 = vadd.xlane.f32.xlu0 %v94
  %v96 = vpop.xlane.xlu0 %95
  %vm97 = vcmask 7168
  %98 = vst.msk [vmem:[%s3] sm:$0xff] %vm97, %v91
  %99 = vst.msk [vmem:[%s4] sm:$0xff] %vm97, %v96
  // Predicated region
  $region10: #{stem_block_forward.11} parent=0 // pred_check
    _
  $region11: #{stem_block_forward.11} parent=0 // pred_check_branch
    %101 = sbr.rel (0) target = $region13
  $region12: #{stem_block_forward.11} parent=0 // pred_region
    _
  $region13: #{stem_block_forward.11} parent=0 // pred_fallthru
    _
  // Predicated region
  $region14: #{stem_block_forward.11} parent=0 // pred_check
    _
  $region15: #{stem_block_forward.11} parent=0 // pred_check_branch
    %103 = sbr.rel (0) target = $region17
  $region16: #{stem_block_forward.11} parent=0 // pred_region
    _
  $region17: #{stem_block_forward.11} parent=0 // pred_fallthru
    _
  // Predicated region
  $region18: #{stem_block_forward.11} parent=0 // pred_check
    _
  $region19: #{stem_block_forward.11} parent=0 // pred_check_branch
    %105 = sbr.rel (0) target = $region21
  $region20: #{stem_block_forward.11} parent=0 // pred_region
    _
  $region21: #{stem_block_forward.11} parent=0 // pred_fallthru
    _
  // Predicated region
  $region22: #{stem_block_forward.11} parent=0 // pred_check
    _
  $region23: #{stem_block_forward.11} parent=0 // pred_check_branch
    %107 = sbr.rel (0) target = $region25
  $region24: #{stem_block_forward.11} parent=0 // pred_region
    _
  $region25: #{stem_block_forward.11} parent=0 // pred_fallthru
    _
  // Predicated region
  $region26: #{stem_block_forward.11} parent=0 // pred_check
    _
  $region27: #{stem_block_forward.11} parent=0 // pred_check_branch
    %109 = sbr.rel (0) target = $region29
  $region28: #{stem_block_forward.11} parent=0 // pred_region
    _
  $region29: #{stem_block_forward.11} parent=0 // pred_fallthru
    _
  // Predicated region
  $region30: #{stem_block_forward.11} parent=0 // pred_check
    _
  $region31: #{stem_block_forward.11} parent=0 // pred_check_branch
    %111 = sbr.rel (0) target = $region33
  $region32: #{stem_block_forward.11} parent=0 // pred_region
    _
  $region33: #{stem_block_forward.11} parent=0 // pred_fallthru
    _

// kernel: stem_block_forward.12
$region0: #{stem_block_forward.12}
  #allocation0 [shape = 'u32[]', space=smem, size = 0x4, offset = 0x4, fixed_abs, tag = 'smem constant byte address 0x4 - core index']
  #allocation1 [shape = 'u32[144,128]{1,0:T(1,128)}', space=vmem, size = 0x12000, scoped, tag = 'internal scratch']
  %s0 = inlined_call_operand.vmem [shape: bf16[8,128], index: 0, kind: input, shape index: {}]
  %s1 = inlined_call_operand.vmem [shape: f32[8,1], index: 1, kind: input, shape index: {}]
  %s2 = inlined_call_operand.vmem [shape: f32[8,1], index: 2, kind: input, shape index: {}]
  %s3 = inlined_call_operand.vmem [shape: bf16[8,128], index: 3, kind: output, shape index: {}]
  %s4 = sld [smem:[#allocation0]]
  $region22: #{stem_block_forward.12} parent=0
    _
  %s6 = ssub.s32 1, %s4
  %s7 = scalar_select 0, %s6, %s4
  // Predicated region
  $region2: #{stem_block_forward.12} parent=0 // pred_check
    _
  $region3: #{stem_block_forward.12} parent=0 // pred_check_branch
    %9 = sbr.rel (0) target = $region5
  $region4: #{stem_block_forward.12} parent=0 // pred_region
    _
  $region5: #{stem_block_forward.12} parent=0 // pred_fallthru
    _
  // Predicated region
  $region6: #{stem_block_forward.12} parent=0 // pred_check
    _
  $region7: #{stem_block_forward.12} parent=0 // pred_check_branch
    %11 = sbr.rel (0) target = $region9
  $region8: #{stem_block_forward.12} parent=0 // pred_region
    _
  $region9: #{stem_block_forward.12} parent=0 // pred_fallthru
    _
  // Predicated region
  $region10: #{stem_block_forward.12} parent=0 // pred_check
    _
  $region11: #{stem_block_forward.12} parent=0 // pred_check_branch
    %13 = sbr.rel (0) target = $region13
  $region12: #{stem_block_forward.12} parent=0 // pred_region
    _
  $region13: #{stem_block_forward.12} parent=0 // pred_fallthru
    _
  %v14 = vld [vmem:[%s0] sm:$0xf]
  %v15 = vunpack.c.l.bf16 %v14
  %v16 = vld [vmem:[%s1] sm:$0xff]
  %18 = vset.pattern.permute.xlu0 0
  %19 = vperm.xlu0 %18, %v16
  %v20 = vpop.permute.xlu0 %19
  %v22 = vmul.f32 %v15, %v20
  %v23 = vld [vmem:[%s2] sm:$0xff]
  %25 = vset.pattern.permute.xlu0 0
  %26 = vperm.xlu0 %25, %v23
  %v27 = vpop.permute.xlu0 %26
  %v29 = vadd.f32 %v22, %v27
  %v30 = vmax.f32 %v29, 0.0
  %v31 = vpack.c.bf16 %v30, %v30
  %32 = vst [vmem:[%s3] sm:$0xf] %v31
  // Predicated region
  $region14: #{stem_block_forward.12} parent=0 // pred_check
    _
  $region15: #{stem_block_forward.12} parent=0 // pred_check_branch
    %34 = sbr.rel (0) target = $region17
  $region16: #{stem_block_forward.12} parent=0 // pred_region
    _
  $region17: #{stem_block_forward.12} parent=0 // pred_fallthru
    _
  // Predicated region
  $region18: #{stem_block_forward.12} parent=0 // pred_check
    _
  $region19: #{stem_block_forward.12} parent=0 // pred_check_branch
    %36 = sbr.rel (0) target = $region21
  $region20: #{stem_block_forward.12} parent=0 // pred_region
    _
  $region21: #{stem_block_forward.12} parent=0 // pred_fallthru
    _

// kernel: stem_block_forward.13
$region0: #{stem_block_forward.13}
  #allocation0 [shape = 'u32[]', space=smem, size = 0x4, offset = 0x4, fixed_abs, tag = 'smem constant byte address 0x4 - core index']
  #allocation1 [shape = 'u32[144,128]{1,0:T(1,128)}', space=vmem, size = 0x12000, scoped, tag = 'internal scratch']
  %s0 = inlined_call_operand.vmem [shape: bf16[16,72], index: 0, kind: input, shape index: {}]
  %s1 = inlined_call_operand.vmem [shape: bf16[72,128], index: 1, kind: input, shape index: {}]
  %s2 = inlined_call_operand.vmem [shape: bf16[16,128], index: 2, kind: output, shape index: {0}]
  %s3 = inlined_call_operand.vmem [shape: f32[1,16,1], index: 3, kind: output, shape index: {1}]
  %s4 = inlined_call_operand.vmem [shape: f32[1,16,1], index: 4, kind: output, shape index: {2}]
  %5 = xla_tuple %s2, %s3, %s4
  %s6 = sld [smem:[#allocation0]]
  $region34: #{stem_block_forward.13} parent=0
    _
  %s8 = ssub.s32 1, %s6
  %s9 = scalar_select 0, %s8, %s6
  // Predicated region
  $region2: #{stem_block_forward.13} parent=0 // pred_check
    _
  $region3: #{stem_block_forward.13} parent=0 // pred_check_branch
    %11 = sbr.rel (0) target = $region5
  $region4: #{stem_block_forward.13} parent=0 // pred_region
    _
  $region5: #{stem_block_forward.13} parent=0 // pred_fallthru
    _
  // Predicated region
  $region6: #{stem_block_forward.13} parent=0 // pred_check
    _
  $region7: #{stem_block_forward.13} parent=0 // pred_check_branch
    %13 = sbr.rel (0) target = $region9
  $region8: #{stem_block_forward.13} parent=0 // pred_region
    _
  $region9: #{stem_block_forward.13} parent=0 // pred_fallthru
    _
  %v15 = vld [vmem:[%s0] sm:$0xf]
  %v16 = vld [vmem:[%s0 + $0x4] sm:$0xf]
  %v17 = vld [vmem:[%s1] sm:$0xf]
  %v18 = vld [vmem:[%s1 + $0x4] sm:$0xf]
  %v19 = vld [vmem:[%s1 + $0x8] sm:$0xf]
  %v20 = vld [vmem:[%s1 + $0xc] sm:$0xf]
  %v21 = vld [vmem:[%s1 + $0x10] sm:$0xf]
  %v22 = vld [vmem:[%s1 + $0x14] sm:$0xf]
  %v23 = vld [vmem:[%s1 + $0x18] sm:$0xf]
  %v24 = vld [vmem:[%s1 + $0x1c] sm:$0xf]
  %v25 = vld [vmem:[%s1 + $0x20] sm:$0xf]
  %v28 = vunpack.c.l.b16 %v15
  %v29 = vunpack.c.l.b16 %v16
  %v30 = vpack.c.b16 %v29, %v28
  %v40 = vunpack.c.l.b16 %v17
  %v41 = vunpack.c.l.b16 %v18
  %v42 = vunpack.c.l.b16 %v19
  %v43 = vunpack.c.l.b16 %v20
  %v44 = vunpack.c.l.b16 %v21
  %v45 = vunpack.c.l.b16 %v22
  %v46 = vunpack.c.l.b16 %v23
  %v47 = vunpack.c.l.b16 %v24
  %v48 = vunpack.c.l.b16 %v25
  %v49 = vpack.c.b16 %v41, %v40
  %v50 = vpack.c.b16 %v43, %v42
  %v51 = vpack.c.b16 %v45, %v44
  %v52 = vpack.c.b16 %v47, %v46
  %v53 = vpack.c.b16 %v48, %v48
  %vm58 = vcmask 588800
  %v60 = vsel %vm58, %v30, 0
  %vm62 = vcmask 1043456
  %v64 = vsel %vm62, %v53, 0
  %66 = vmatprep.subr.bf16.mxu0 0
  %67 = vmatpush1.bf16.msra.mxu0 %v49
  %68 = vmatprep.subr.bf16.mxu0 0
  %69 = vmatpush1.bf16.msra.mxu0 %v50
  %70 = vmatprep.subr.bf16.mxu0 0
  %71 = vmatpush1.bf16.msra.mxu0 %v51
  %72 = vmatprep.subr.bf16.mxu0 0
  %73 = vmatpush1.bf16.msra.mxu0 %v52
  %74 = vmatprep.subr.bf16.mxu0 0
  %75 = vmatpush1.bf16.msra.mxu0 %v64
  %76 = vmatprep.subr.bf16.mxu0 0
  %77 = vmatpush1.bf16.msra.mxu0 0
  %78 = vmatprep.subr.bf16.mxu0 0
  %79 = vmatpush1.bf16.msra.mxu0 0
  %80 = vmatprep.subr.bf16.mxu0 0
  %81 = vmatpush1.bf16.msra.mxu0 0
  %82 = vmatprep.subr.bf16.mxu0 0
  %83 = vmatpush1.bf16.msra.mxu0 0
  %84 = vmatprep.subr.bf16.mxu0 0
  %85 = vmatpush1.bf16.msra.mxu0 0
  %86 = vmatprep.subr.bf16.mxu0 0
  %87 = vmatpush1.bf16.msra.mxu0 0
  %88 = vmatprep.subr.bf16.mxu0 0
  %89 = vmatpush1.bf16.msra.mxu0 0
  %90 = vmatprep.subr.bf16.mxu0 0
  %91 = vmatpush1.bf16.msra.mxu0 0
  %92 = vmatprep.subr.bf16.mxu0 0
  %93 = vmatpush1.bf16.msra.mxu0 0
  %94 = vmatprep.subr.bf16.mxu0 0
  %95 = vmatpush1.bf16.msra.mxu0 0
  %96 = vmatprep.subr.bf16.mxu0 0
  %97 = vmatpush1.bf16.msra.mxu0 0
  %98 = vmatprep.mubr.bf16.mxu0 0
  %99 = vmatmul.mubr.bf16.gmra.mrb[0].mxu0 %v60
  %v100 = vpop.f32.mrb[0].mxu0
  %v101 = vadd.f32 0.0, %v100
  %v102 = vpop.f32.mrb[0].mxu0
  %v103 = vpop.f32.mrb[0].mxu0
  %v104 = vadd.f32 0.0, %v103
  %v105 = vpop.f32.mrb[0].mxu0
  %106 = vdwg.mxu0
  %v107 = vpack.c.bf16 %v104, %v101
  %v109 = vunpack.c.l.b16 %v107
  %v110 = vunpack.c.h.b16 %v107
  %v111 = vpack.c.b16 %v109, %v109
  %v112 = vpack.c.b16 %v110, %v110
  %115 = vst [vmem:[%s2] sm:$0xf] %v111
  %116 = vst [vmem:[%s2 + $0x4] sm:$0xf] %v112
  %s117 = smul.u32 0, 128
  %v118 = vlaneseq
  %v119 = vand.u32 %v118, 127
  %v120 = vstv %s117
  %v121 = vadd.s32 %v120, %v119
  %vm122 = vcmp.lt.s32.totalorder %v121, 32
  %s123 = ssub.s32 32, %s117
  %p124 = scmp.lt.s32.totalorder %s123, 128
  %s125 = scalar_select %p124, %s123, 128
  %p126 = scmp.gt.s32.totalorder %s125, 1
  %s127 = scalar_select %p126, %s125, 1
  %s128 = scvt.s32.f32 %s127
  %v129 = vstv %s128
  %v130 = vrcp.pop %v129
  %s131 = vtos %v130
  %v132 = vsel %vm122, 1, 0
  %vm133 = vcmp.eq.s32.totalorder %v132, 1
  %v134 = vsel %vm133, %v101, 0.0
  %v135 = vsel %vm133, %v104, 0.0
  %136 = vadd.xlane.f32.xlu0 %v134
  %v137 = vpop.xlane.xlu0 %136
  %138 = vadd.xlane.f32.xlu0 %v135
  %v139 = vpop.xlane.xlu0 %138
  %v140 = vstv %s131
  %v141 = vmul.f32 %v137, %v140
  %v142 = vmul.f32 %v139, %v140
  %v143 = vsub.f32 %v101, %v141
  %v144 = vsub.f32 %v104, %v142
  %v145 = vsel %vm133, %v143, 0.0
  %v146 = vsel %vm133, %v144, 0.0
  %v147 = vmul.f32 %v145, %v145
  %v148 = vmul.f32 %v146, %v146
  %149 = vadd.xlane.f32.xlu0 %v147
  %v150 = vpop.xlane.xlu0 %149
  %151 = vadd.xlane.f32.xlu0 %v148
  %v152 = vpop.xlane.xlu0 %151
  %vm153 = vcmask 7168
  %154 = vst.msk [vmem:[%s3] sm:$0xff] %vm153, %v141
  %155 = vst.msk [vmem:[%s3 + $0x8] sm:$0xff] %vm153, %v142
  %156 = vst.msk [vmem:[%s4] sm:$0xff] %vm153, %v150
  %157 = vst.msk [vmem:[%s4 + $0x8] sm:$0xff] %vm153, %v152
  // Predicated region
  $region10: #{stem_block_forward.13} parent=0 // pred_check
    _
  $region11: #{stem_block_forward.13} parent=0 // pred_check_branch
    %159 = sbr.rel (0) target = $region13
  $region12: #{stem_block_forward.13} parent=0 // pred_region
    _
  $region13: #{stem_block_forward.13} parent=0 // pred_fallthru
    _
  // Predicated region
  $region14: #{stem_block_forward.13} parent=0 // pred_check
    _
  $region15: #{stem_block_forward.13} parent=0 // pred_check_branch
    %161 = sbr.rel (0) target = $region17
  $region16: #{stem_block_forward.13} parent=0 // pred_region
    _
  $region17: #{stem_block_forward.13} parent=0 // pred_fallthru
    _
  // Predicated region
  $region18: #{stem_block_forward.13} parent=0 // pred_check
    _
  $region19: #{stem_block_forward.13} parent=0 // pred_check_branch
    %163 = sbr.rel (0) target = $region21
  $region20: #{stem_block_forward.13} parent=0 // pred_region
    _
  $region21: #{stem_block_forward.13} parent=0 // pred_fallthru
    _
  // Predicated region
  $region22: #{stem_block_forward.13} parent=0 // pred_check
    _
  $region23: #{stem_block_forward.13} parent=0 // pred_check_branch
    %165 = sbr.rel (0) target = $region25
  $region24: #{stem_block_forward.13} parent=0 // pred_region
    _
  $region25: #{stem_block_forward.13} parent=0 // pred_fallthru
    _
  // Predicated region
  $region26: #{stem_block_forward.13} parent=0 // pred_check
    _
  $region27: #{stem_block_forward.13} parent=0 // pred_check_branch
    %167 = sbr.rel (0) target = $region29
  $region28: #{stem_block_forward.13} parent=0 // pred_region
    _
  $region29: #{stem_block_forward.13} parent=0 // pred_fallthru
    _
  // Predicated region
  $region30: #{stem_block_forward.13} parent=0 // pred_check
    _
  $region31: #{stem_block_forward.13} parent=0 // pred_check_branch
    %169 = sbr.rel (0) target = $region33
  $region32: #{stem_block_forward.13} parent=0 // pred_region
    _
  $region33: #{stem_block_forward.13} parent=0 // pred_fallthru
    _

// kernel: stem_block_forward.15
$region0: #{stem_block_forward.15}
  #allocation0 [shape = 'u32[]', space=smem, size = 0x4, offset = 0x4, fixed_abs, tag = 'smem constant byte address 0x4 - core index']
  #allocation1 [shape = 'u32[144,128]{1,0:T(1,128)}', space=vmem, size = 0x12000, scoped, tag = 'internal scratch']
  %s0 = inlined_call_operand.vmem [shape: bf16[9,16,128], index: 0, kind: input, shape index: {}]
  %s1 = inlined_call_operand.vmem [shape: bf16[16,128], index: 1, kind: output, shape index: {}]
  %s2 = sld [smem:[#allocation0]]
  $region14: #{stem_block_forward.15} parent=0
    _
  %s4 = ssub.s32 1, %s2
  %s5 = scalar_select 0, %s4, %s2
  // Predicated region
  $region2: #{stem_block_forward.15} parent=0 // pred_check
    _
  $region3: #{stem_block_forward.15} parent=0 // pred_check_branch
    %7 = sbr.rel (0) target = $region5
  $region4: #{stem_block_forward.15} parent=0 // pred_region
    _
  $region5: #{stem_block_forward.15} parent=0 // pred_fallthru
    _
  %v9 = vld [vmem:[%s0] sm:$0xf]
  %v10 = vld [vmem:[%s0 + $0x4] sm:$0xf]
  %v11 = vld [vmem:[%s0 + $0x8] sm:$0xf]
  %v12 = vld [vmem:[%s0 + $0xc] sm:$0xf]
  %v13 = vld [vmem:[%s0 + $0x10] sm:$0xf]
  %v14 = vld [vmem:[%s0 + $0x14] sm:$0xf]
  %v15 = vld [vmem:[%s0 + $0x18] sm:$0xf]
  %v16 = vld [vmem:[%s0 + $0x1c] sm:$0xf]
  %v17 = vld [vmem:[%s0 + $0x20] sm:$0xf]
  %v18 = vld [vmem:[%s0 + $0x24] sm:$0xf]
  %v19 = vld [vmem:[%s0 + $0x28] sm:$0xf]
  %v20 = vld [vmem:[%s0 + $0x2c] sm:$0xf]
  %v21 = vld [vmem:[%s0 + $0x30] sm:$0xf]
  %v22 = vld [vmem:[%s0 + $0x34] sm:$0xf]
  %v23 = vld [vmem:[%s0 + $0x38] sm:$0xf]
  %v24 = vld [vmem:[%s0 + $0x3c] sm:$0xf]
  %v25 = vld [vmem:[%s0 + $0x40] sm:$0xf]
  %v26 = vld [vmem:[%s0 + $0x44] sm:$0xf]
  %vm27 = vcmask 1043456
  %v30 = vsel %vm27, %v9, 4286644096
  %v33 = vsel %vm27, %v11, 4286644096
  %v36 = vsel %vm27, %v13, 4286644096
  %v38 = vmax.bf16 %v30, %v36
  %v40 = vsel %vm27, %v15, 4286644096
  %v42 = vmax.bf16 %v33, %v40
  %v44 = vsel %vm27, %v17, 4286644096
  %v46 = vmax.bf16 %v38, %v44
  %v48 = vsel %vm27, %v19, 4286644096
  %v50 = vmax.bf16 %v42, %v48
  %v52 = vsel %vm27, %v21, 4286644096
  %v54 = vmax.bf16 %v46, %v52
  %v56 = vsel %vm27, %v23, 4286644096
  %v58 = vmax.bf16 %v50, %v56
  %v60 = vsel %vm27, %v25, 4286644096
  %v62 = vmax.bf16 %v54, %v60
  %v63 = vmax.bf16 %v62, %v58
  %v65 = vsel %vm27, %v10, 4286644096
  %v68 = vsel %vm27, %v12, 4286644096
  %v71 = vsel %vm27, %v14, 4286644096
  %v73 = vmax.bf16 %v65, %v71
  %v75 = vsel %vm27, %v16, 4286644096
  %v77 = vmax.bf16 %v68, %v75
  %v79 = vsel %vm27, %v18, 4286644096
  %v81 = vmax.bf16 %v73, %v79
  %v83 = vsel %vm27, %v20, 4286644096
  %v85 = vmax.bf16 %v77, %v83
  %v87 = vsel %vm27, %v22, 4286644096
  %v89 = vmax.bf16 %v81, %v87
  %v91 = vsel %vm27, %v24, 4286644096
  %v93 = vmax.bf16 %v85, %v91
  %v95 = vsel %vm27, %v26, 4286644096
  %v97 = vmax.bf16 %v89, %v95
  %v98 = vmax.bf16 %v97, %v93
  %99 = vst [vmem:[%s1] sm:$0xf] %v63
  %100 = vst [vmem:[%s1 + $0x4] sm:$0xf] %v98
  // Predicated region
  $region6: #{stem_block_forward.15} parent=0 // pred_check
    _
  $region7: #{stem_block_forward.15} parent=0 // pred_check_branch
    %102 = sbr.rel (0) target = $region9
  $region8: #{stem_block_forward.15} parent=0 // pred_region
    _
  $region9: #{stem_block_forward.15} parent=0 // pred_fallthru
    _
  // Predicated region
  $region10: #{stem_block_forward.15} parent=0 // pred_check
    _
  $region11: #{stem_block_forward.15} parent=0 // pred_check_branch
    %104 = sbr.rel (0) target = $region13
  $region12: #{stem_block_forward.15} parent=0 // pred_region
    _
  $region13: #{stem_block_forward.15} parent=0 // pred_fallthru
    _

// kernel: stem_block_forward.16
$region0: #{stem_block_forward.16}
  #allocation0 [shape = 'u32[]', space=smem, size = 0x4, offset = 0x4, fixed_abs, tag = 'smem constant byte address 0x4 - core index']
  #allocation1 [shape = 'u32[144,128]{1,0:T(1,128)}', space=vmem, size = 0x12000, scoped, tag = 'internal scratch']
  %s0 = inlined_call_operand.vmem [shape: bf16[16,288], index: 0, kind: input, shape index: {}]
  %s1 = inlined_call_operand.vmem [shape: bf16[288,128], index: 1, kind: input, shape index: {}]
  %s2 = inlined_call_operand.vmem [shape: bf16[16,128], index: 2, kind: output, shape index: {0}]
  %s3 = inlined_call_operand.vmem [shape: f32[1,16,1], index: 3, kind: output, shape index: {1}]
  %s4 = inlined_call_operand.vmem [shape: f32[1,16,1], index: 4, kind: output, shape index: {2}]
  %5 = xla_tuple %s2, %s3, %s4
  %s6 = sld [smem:[#allocation0]]
  $region34: #{stem_block_forward.16} parent=0
    _
  %s8 = ssub.s32 1, %s6
  %s9 = scalar_select 0, %s8, %s6
  // Predicated region
  $region2: #{stem_block_forward.16} parent=0 // pred_check
    _
  $region3: #{stem_block_forward.16} parent=0 // pred_check_branch
    %11 = sbr.rel (0) target = $region5
  $region4: #{stem_block_forward.16} parent=0 // pred_region
    _
  $region5: #{stem_block_forward.16} parent=0 // pred_fallthru
    _
  // Predicated region
  $region6: #{stem_block_forward.16} parent=0 // pred_check
    _
  $region7: #{stem_block_forward.16} parent=0 // pred_check_branch
    %13 = sbr.rel (0) target = $region9
  $region8: #{stem_block_forward.16} parent=0 // pred_region
    _
  $region9: #{stem_block_forward.16} parent=0 // pred_fallthru
    _
  %v15 = vld [vmem:[%s0] sm:$0xff]
  %v16 = vld [vmem:[%s0 + $0x8] sm:$0xf]
  %v17 = vld [vmem:[%s0 + $0xc] sm:$0xff]
  %v18 = vld [vmem:[%s0 + $0x14] sm:$0xf]
  %v19 = vld [vmem:[%s1] sm:$0xf]
  %v20 = vld [vmem:[%s1 + $0x4] sm:$0xf]
  %v21 = vld [vmem:[%s1 + $0x8] sm:$0xf]
  %v22 = vld [vmem:[%s1 + $0xc] sm:$0xf]
  %v23 = vld [vmem:[%s1 + $0x10] sm:$0xf]
  %v24 = vld [vmem:[%s1 + $0x14] sm:$0xf]
  %v25 = vld [vmem:[%s1 + $0x18] sm:$0xf]
  %v26 = vld [vmem:[%s1 + $0x1c] sm:$0xf]
  %v27 = vld [vmem:[%s1 + $0x20] sm:$0xf]
  %v28 = vld [vmem:[%s1 + $0x24] sm:$0xf]
  %v29 = vld [vmem:[%s1 + $0x28] sm:$0xf]
  %v30 = vld [vmem:[%s1 + $0x2c] sm:$0xf]
  %v31 = vld [vmem:[%s1 + $0x30] sm:$0xf]
  %v32 = vld [vmem:[%s1 + $0x34] sm:$0xf]
  %v33 = vld [vmem:[%s1 + $0x38] sm:$0xf]
  %v34 = vld [vmem:[%s1 + $0x3c] sm:$0xf]
  %v35 = vld [vmem:[%s1 + $0x40] sm:$0xf]
  %v36 = vld [vmem:[%s1 + $0x44] sm:$0xf]
  %v37 = vld [vmem:[%s1 + $0x48] sm:$0xf]
  %v38 = vld [vmem:[%s1 + $0x4c] sm:$0xf]
  %v39 = vld [vmem:[%s1 + $0x50] sm:$0xf]
  %v40 = vld [vmem:[%s1 + $0x54] sm:$0xf]
  %v41 = vld [vmem:[%s1 + $0x58] sm:$0xf]
  %v42 = vld [vmem:[%s1 + $0x5c] sm:$0xf]
  %v43 = vld [vmem:[%s1 + $0x60] sm:$0xf]
  %v44 = vld [vmem:[%s1 + $0x64] sm:$0xf]
  %v45 = vld [vmem:[%s1 + $0x68] sm:$0xf]
  %v46 = vld [vmem:[%s1 + $0x6c] sm:$0xf]
  %v47 = vld [vmem:[%s1 + $0x70] sm:$0xf]
  %v48 = vld [vmem:[%s1 + $0x74] sm:$0xf]
  %v49 = vld [vmem:[%s1 + $0x78] sm:$0xf]
  %v50 = vld [vmem:[%s1 + $0x7c] sm:$0xf]
  %v51 = vld [vmem:[%s1 + $0x80] sm:$0xf]
  %v52 = vld [vmem:[%s1 + $0x84] sm:$0xf]
  %v53 = vld [vmem:[%s1 + $0x88] sm:$0xf]
  %v54 = vld [vmem:[%s1 + $0x8c] sm:$0xf]
  %v59 = vunpack.c.l.b16 %v15
  %v60 = vunpack.c.h.b16 %v15
  %v61 = vunpack.c.l.b16 %v16
  %v62 = vunpack.c.l.b16 %v17
  %v63 = vunpack.c.h.b16 %v17
  %v64 = vunpack.c.l.b16 %v18
  %v65 = vpack.c.b16 %v62, %v59
  %v66 = vpack.c.b16 %v63, %v60
  %v67 = vpack.c.b16 %v64, %v61
  %v106 = vunpack.c.l.b16 %v19
  %v107 = vunpack.c.l.b16 %v20
  %v108 = vunpack.c.l.b16 %v21
  %v109 = vunpack.c.l.b16 %v22
  %v110 = vunpack.c.l.b16 %v23
  %v111 = vunpack.c.l.b16 %v24
  %v112 = vunpack.c.l.b16 %v25
  %v113 = vunpack.c.l.b16 %v26
  %v114 = vunpack.c.l.b16 %v27
  %v115 = vunpack.c.l.b16 %v28
  %v116 = vunpack.c.l.b16 %v29
  %v117 = vunpack.c.l.b16 %v30
  %v118 = vunpack.c.l.b16 %v31
  %v119 = vunpack.c.l.b16 %v32
  %v120 = vunpack.c.l.b16 %v33
  %v121 = vunpack.c.l.b16 %v34
  %v122 = vunpack.c.l.b16 %v35
  %v123 = vunpack.c.l.b16 %v36
  %v124 = vunpack.c.l.b16 %v37
  %v125 = vunpack.c.l.b16 %v38
  %v126 = vunpack.c.l.b16 %v39
  %v127 = vunpack.c.l.b16 %v40
  %v128 = vunpack.c.l.b16 %v41
  %v129 = vunpack.c.l.b16 %v42
  %v130 = vunpack.c.l.b16 %v43
  %v131 = vunpack.c.l.b16 %v44
  %v132 = vunpack.c.l.b16 %v45
  %v133 = vunpack.c.l.b16 %v46
  %v134 = vunpack.c.l.b16 %v47
  %v135 = vunpack.c.l.b16 %v48
  %v136 = vunpack.c.l.b16 %v49
  %v137 = vunpack.c.l.b16 %v50
  %v138 = vunpack.c.l.b16 %v51
  %v139 = vunpack.c.l.b16 %v52
  %v140 = vunpack.c.l.b16 %v53
  %v141 = vunpack.c.l.b16 %v54
  %v142 = vpack.c.b16 %v107, %v106
  %v143 = vpack.c.b16 %v109, %v108
  %v144 = vpack.c.b16 %v111, %v110
  %v145 = vpack.c.b16 %v113, %v112
  %v146 = vpack.c.b16 %v115, %v114
  %v147 = vpack.c.b16 %v117, %v116
  %v148 = vpack.c.b16 %v119, %v118
  %v149 = vpack.c.b16 %v121, %v120
  %v150 = vpack.c.b16 %v123, %v122
  %v151 = vpack.c.b16 %v125, %v124
  %v152 = vpack.c.b16 %v127, %v126
  %v153 = vpack.c.b16 %v129, %v128
  %v154 = vpack.c.b16 %v131, %v130
  %v155 = vpack.c.b16 %v133, %v132
  %v156 = vpack.c.b16 %v135, %v134
  %v157 = vpack.c.b16 %v137, %v136
  %v158 = vpack.c.b16 %v139, %v138
  %v159 = vpack.c.b16 %v141, %v140
  %vm178 = vcmask 261120
  %v180 = vsel %vm178, %v67, 0
  %182 = vmatprep.subr.bf16.mxu0 0
  %183 = vmatpush1.bf16.msra.mxu0 %v142
  %184 = vmatprep.subr.bf16.mxu0 0
  %185 = vmatpush1.bf16.msra.mxu0 %v143
  %186 = vmatprep.subr.bf16.mxu0 0
  %187 = vmatpush1.bf16.msra.mxu0 %v144
  %188 = vmatprep.subr.bf16.mxu0 0
  %189 = vmatpush1.bf16.msra.mxu0 %v145
  %190 = vmatprep.subr.bf16.mxu0 0
  %191 = vmatpush1.bf16.msra.mxu0 %v146
  %192 = vmatprep.subr.bf16.mxu0 0
  %193 = vmatpush1.bf16.msra.mxu0 %v147
  %194 = vmatprep.subr.bf16.mxu0 0
  %195 = vmatpush1.bf16.msra.mxu0 %v148
  %196 = vmatprep.subr.bf16.mxu0 0
  %197 = vmatpush1.bf16.msra.mxu0 %v149
  %198 = vmatprep.subr.bf16.mxu0 0
  %199 = vmatpush1.bf16.msra.mxu0 %v150
  %200 = vmatprep.subr.bf16.mxu0 0
  %201 = vmatpush1.bf16.msra.mxu0 %v151
  %202 = vmatprep.subr.bf16.mxu0 0
  %203 = vmatpush1.bf16.msra.mxu0 %v152
  %204 = vmatprep.subr.bf16.mxu0 0
  %205 = vmatpush1.bf16.msra.mxu0 %v153
  %206 = vmatprep.subr.bf16.mxu0 0
  %207 = vmatpush1.bf16.msra.mxu0 %v154
  %208 = vmatprep.subr.bf16.mxu0 0
  %209 = vmatpush1.bf16.msra.mxu0 %v155
  %210 = vmatprep.subr.bf16.mxu0 0
  %211 = vmatpush1.bf16.msra.mxu0 %v156
  %212 = vmatprep.subr.bf16.mxu0 0
  %213 = vmatpush1.bf16.msra.mxu0 %v157
  %214 = vmatprep.mubr.bf16.mxu0 %v66
  %215 = vmatmul.mubr.bf16.gmra.mrb[0].mxu0 %v65
  %v216 = vpop.f32.mrb[0].mxu0
  %v217 = vadd.f32 0.0, %v216
  %v218 = vpop.f32.mrb[0].mxu0
  %v219 = vpop.f32.mrb[0].mxu0
  %v220 = vadd.f32 0.0, %v219
  %v221 = vpop.f32.mrb[0].mxu0
  %222 = vdwg.mxu0
  %223 = vmatprep.subr.bf16.mxu0 0
  %224 = vmatpush1.bf16.msra.mxu0 %v158
  %225 = vmatprep.subr.bf16.mxu0 0
  %226 = vmatpush1.bf16.msra.mxu0 %v159
  %227 = vmatprep.subr.bf16.mxu0 0
  %228 = vmatpush1.bf16.msra.mxu0 0
  %229 = vmatprep.subr.bf16.mxu0 0
  %230 = vmatpush1.bf16.msra.mxu0 0
  %231 = vmatprep.subr.bf16.mxu0 0
  %232 = vmatpush1.bf16.msra.mxu0 0
  %233 = vmatprep.subr.bf16.mxu0 0
  %234 = vmatpush1.bf16.msra.mxu0 0
  %235 = vmatprep.subr.bf16.mxu0 0
  %236 = vmatpush1.bf16.msra.mxu0 0
  %237 = vmatprep.subr.bf16.mxu0 0
  %238 = vmatpush1.bf16.msra.mxu0 0
  %239 = vmatprep.subr.bf16.mxu0 0
  %240 = vmatpush1.bf16.msra.mxu0 0
  %241 = vmatprep.subr.bf16.mxu0 0
  %242 = vmatpush1.bf16.msra.mxu0 0
  %243 = vmatprep.subr.bf16.mxu0 0
  %244 = vmatpush1.bf16.msra.mxu0 0
  %245 = vmatprep.subr.bf16.mxu0 0
  %246 = vmatpush1.bf16.msra.mxu0 0
  %247 = vmatprep.subr.bf16.mxu0 0
  %248 = vmatpush1.bf16.msra.mxu0 0
  %249 = vmatprep.subr.bf16.mxu0 0
  %250 = vmatpush1.bf16.msra.mxu0 0
  %251 = vmatprep.subr.bf16.mxu0 0
  %252 = vmatpush1.bf16.msra.mxu0 0
  %253 = vmatprep.subr.bf16.mxu0 0
  %254 = vmatpush1.bf16.msra.mxu0 0
  %255 = vmatprep.mubr.bf16.mxu0 0
  %256 = vmatmul.mubr.bf16.gmra.mrb[0].mxu0 %v180
  %v257 = vpop.f32.mrb[0].mxu0
  %v258 = vadd.f32 %v217, %v257
  %v259 = vpop.f32.mrb[0].mxu0
  %v260 = vpop.f32.mrb[0].mxu0
  %v261 = vadd.f32 %v220, %v260
  %v262 = vpop.f32.mrb[0].mxu0
  %263 = vdwg.mxu0
  %v264 = vpack.c.bf16 %v261, %v258
  %v266 = vunpack.c.l.b16 %v264
  %v267 = vunpack.c.h.b16 %v264
  %v268 = vpack.c.b16 %v266, %v266
  %v269 = vpack.c.b16 %v267, %v267
  %272 = vst [vmem:[%s2] sm:$0xf] %v268
  %273 = vst [vmem:[%s2 + $0x4] sm:$0xf] %v269
  %s274 = smul.u32 0, 128
  %v275 = vlaneseq
  %v276 = vand.u32 %v275, 127
  %v277 = vstv %s274
  %v278 = vadd.s32 %v277, %v276
  %vm279 = vcmp.lt.s32.totalorder %v278, 32
  %s280 = ssub.s32 32, %s274
  %p281 = scmp.lt.s32.totalorder %s280, 128
  %s282 = scalar_select %p281, %s280, 128
  %p283 = scmp.gt.s32.totalorder %s282, 1
  %s284 = scalar_select %p283, %s282, 1
  %s285 = scvt.s32.f32 %s284
  %v286 = vstv %s285
  %v287 = vrcp.pop %v286
  %s288 = vtos %v287
  %v289 = vsel %vm279, 1, 0
  %vm290 = vcmp.eq.s32.totalorder %v289, 1
  %v291 = vsel %vm290, %v258, 0.0
  %v292 = vsel %vm290, %v261, 0.0
  %293 = vadd.xlane.f32.xlu0 %v291
  %v294 = vpop.xlane.xlu0 %293
  %295 = vadd.xlane.f32.xlu0 %v292
  %v296 = vpop.xlane.xlu0 %295
  %v297 = vstv %s288
  %v298 = vmul.f32 %v294, %v297
  %v299 = vmul.f32 %v296, %v297
  %v300 = vsub.f32 %v258, %v298
  %v301 = vsub.f32 %v261, %v299
  %v302 = vsel %vm290, %v300, 0.0
  %v303 = vsel %vm290, %v301, 0.0
  %v304 = vmul.f32 %v302, %v302
  %v305 = vmul.f32 %v303, %v303
  %306 = vadd.xlane.f32.xlu0 %v304
  %v307 = vpop.xlane.xlu0 %306
  %308 = vadd.xlane.f32.xlu0 %v305
  %v309 = vpop.xlane.xlu0 %308
  %vm310 = vcmask 7168
  %311 = vst.msk [vmem:[%s3] sm:$0xff] %vm310, %v298
  %312 = vst.msk [vmem:[%s3 + $0x8] sm:$0xff] %vm310, %v299
  %313 = vst.msk [vmem:[%s4] sm:$0xff] %vm310, %v307
  %314 = vst.msk [vmem:[%s4 + $0x8] sm:$0xff] %vm310, %v309
  // Predicated region
  $region10: #{stem_block_forward.16} parent=0 // pred_check
    _
  $region11: #{stem_block_forward.16} parent=0 // pred_check_branch
    %316 = sbr.rel (0) target = $region13
  $region12: #{stem_block_forward.16} parent=0 // pred_region
    _
  $region13: #{stem_block_forward.16} parent=0 // pred_fallthru
    _
  // Predicated region
  $region14: #{stem_block_forward.16} parent=0 // pred_check
    _
  $region15: #{stem_block_forward.16} parent=0 // pred_check_branch
    %318 = sbr.rel (0) target = $region17
  $region16: #{stem_block_forward.16} parent=0 // pred_region
    _
  $region17: #{stem_block_forward.16} parent=0 // pred_fallthru
    _
  // Predicated region
  $region18: #{stem_block_forward.16} parent=0 // pred_check
    _
  $region19: #{stem_block_forward.16} parent=0 // pred_check_branch
    %320 = sbr.rel (0) target = $region21
  $region20: #{stem_block_forward.16} parent=0 // pred_region
    _
  $region21: #{stem_block_forward.16} parent=0 // pred_fallthru
    _
  // Predicated region
  $region22: #{stem_block_forward.16} parent=0 // pred_check
    _
  $region23: #{stem_block_forward.16} parent=0 // pred_check_branch
    %322 = sbr.rel (0) target = $region25
  $region24: #{stem_block_forward.16} parent=0 // pred_region
    _
  $region25: #{stem_block_forward.16} parent=0 // pred_fallthru
    _
  // Predicated region
  $region26: #{stem_block_forward.16} parent=0 // pred_check
    _
  $region27: #{stem_block_forward.16} parent=0 // pred_check_branch
    %324 = sbr.rel (0) target = $region29
  $region28: #{stem_block_forward.16} parent=0 // pred_region
    _
  $region29: #{stem_block_forward.16} parent=0 // pred_fallthru
    _
  // Predicated region
  $region30: #{stem_block_forward.16} parent=0 // pred_check
    _
  $region31: #{stem_block_forward.16} parent=0 // pred_check_branch
    %326 = sbr.rel (0) target = $region33
  $region32: #{stem_block_forward.16} parent=0 // pred_region
    _
  $region33: #{stem_block_forward.16} parent=0 // pred_fallthru
    _

</llo_original>
